<compile_context>
chip_gen: v7x
topology: tpu7x:2x2x1
jax: 0.10.0
libtpu: 0.0.40
codegen_flags: <defaults>
</compile_context>

<pallas_src>
import numpy as np
import jax
import jax.numpy as jnp
from jax.experimental import pallas as pl
from jax.experimental.pallas import tpu as pltpu


# -----------------------------------------------------------------------------
# Packed-slab layout for the small operands (one DMA instead of many tiny
# ones).  Row offsets are multiples of 8 so in-kernel slices stay
# sublane-aligned.
# -----------------------------------------------------------------------------
def _small_slab_layout(batch):
    lay, cur = {}, 0

    def add(name, rows, cols):
        nonlocal cur
        lay[name] = (cur, rows, cols)
        cur = ((cur + rows + 7) // 8) * 8

    add("w1", 9, 16)                    # conv1 weight, (ka,kb) x cout
    add("b1", 1, 16)
    add("sel", 16 * batch, 9 * batch)   # conv2 patch-selection matrix
    add("w2", 64, 8)                    # conv2 weight, (tap,cin) x cout
    add("b2", 1, 8)
    add("wt1", 8, 144)                  # convT1 weight, cin x (h,w,cout)
    add("bt1", 1, 144)
    width = max(c for (_, _, c) in lay.values())
    return lay, cur, width


# -----------------------------------------------------------------------------
# Fused forward kernel (single invocation, everything lives in vregs)
# -----------------------------------------------------------------------------
def _make_kernel(N, lay):
    n9 = 9 * N          # rows per pooling-window corner in the conv1 matmul

    def kernel(p1_ref, small_ref, wt2_ref, w3_ref, out_ref):
        f32 = jnp.float32

        def take(name):
            r0, nr, nc = lay[name]
            return small_ref[r0:r0 + nr, 0:nc]

        # ---- Conv2d(1,16,3,s=3,p=2) + bias + ReLU fused with MaxPool2d(2,2).
        # One matmul over all 4 pool corners, then a 4-way max of row blocks
        # (bias add and ReLU commute with the max).
        c1 = jnp.dot(p1_ref[...], take("w1"), preferred_element_type=f32)
        c1 = jnp.maximum(jnp.maximum(c1[0 * n9:1 * n9], c1[1 * n9:2 * n9]),
                         jnp.maximum(c1[2 * n9:3 * n9], c1[3 * n9:4 * n9]))
        h1 = jnp.maximum(c1 + take("b1"), 0.0)           # (9N,16) rows=(n,py,px)

        # ---- Conv2d(16,8,2,s=2,p=1) + bias + ReLU fused with MaxPool2d(2,2).
        # Patch gather (incl. the padding=1 zero ring) is a constant selection
        # matrix on the MXU; per-tap matmuls are summed -- no scatter stores.
        m = jnp.dot(take("sel"), h1, preferred_element_type=f32)     # (16N,16)
        w2 = take("w2")                                              # (64,8)
        c2 = jnp.dot(m[0:4 * N], w2[0:16], preferred_element_type=f32)
        for tap in range(1, 4):
            c2 = c2 + jnp.dot(m[tap * 4 * N:(tap + 1) * 4 * N],
                              w2[tap * 16:(tap + 1) * 16],
                              preferred_element_type=f32)            # (4N,8)
        c2 = jnp.maximum(jnp.maximum(c2[0:N], c2[N:2 * N]),
                         jnp.maximum(c2[2 * N:3 * N], c2[3 * N:4 * N]))
        z = jnp.maximum(c2 + take("b2"), 0.0)                        # (N,8)

        # ---- ConvTranspose2d(8,16,3,s=3) + ReLU   (1x1 -> 3x3, one matmul)
        d1 = jnp.maximum(
            jnp.dot(z, take("wt1"), preferred_element_type=f32) + take("bt1"),
            0.0)                                                     # (N,144)

        # ---- ConvTranspose2d(16,8,3,s=3,p=1) + ReLU.
        # Depth-to-space folded into a block-diagonal weight (last slab row is
        # the tiled bias) -> one matmul, no rearrangement.
        y2 = jnp.maximum(
            jnp.dot(d1, wt2_ref[0:144, :], preferred_element_type=f32)
            + wt2_ref[144:145, :], 0.0)                              # (N,648)

        # ---- crop(pad=1) + ConvTranspose2d(8,1,2,s=2) + Tanh folded into one
        # (648,196) matrix -> lane-dense output, single store.
        out_ref[...] = jnp.tanh(
            jnp.dot(y2, w3_ref[0:648, :], preferred_element_type=f32)
            + w3_ref[648:649, :])                                    # (N,196)

    return kernel


def autoencoder_forward(kparams, x):
    """x: (N,1,28,28) float32 NCHW -> (N,1,14,14), matching Autoencoder.forward."""
    N = x.shape[0]
    lay, _, _ = _small_slab_layout(N)

    # conv1 im2col (stride == kernel -> pad + block reshape).  Only padded
    # rows/cols 0..17 (top/left pad of 2 + original rows/cols 0..15) can reach
    # the decoder, so only those patches are built.  Layout:
    #   rows: (pool corner k=(ii,jj)) x (n,py,px),  cols: (ka,kb)
    xp = jnp.pad(x[:, 0, :16, :16].astype(jnp.float32),
                 ((0, 0), (2, 0), (2, 0)))                   # (N,18,18)
    p1 = xp.reshape(N, 3, 2, 3, 3, 2, 3)                     # n,py,ii,ka,px,jj,kb
    p1 = p1.transpose(2, 5, 0, 1, 4, 3, 6).reshape(36 * N, 9)

    out = pl.pallas_call(
        _make_kernel(N, lay),
        out_shape=jax.ShapeDtypeStruct((N, 196), jnp.float32),
        in_specs=[pl.BlockSpec(memory_space=pltpu.MemorySpace.VMEM)] * 4,
        out_specs=pl.BlockSpec(memory_space=pltpu.MemorySpace.VMEM),
    )(p1, kparams["small"], kparams["wt2"], kparams["w3"])
    return out.reshape(N, 1, 14, 14)                         # depth-to-space is free


# -----------------------------------------------------------------------------
# Parameters: PyTorch-layout init + one-time folding into the kernel operands
# -----------------------------------------------------------------------------
def _init_conv(key, cout, cin, k):
    kw_, kb_ = jax.random.split(key)
    bound = 1.0 / float(np.sqrt(cin * k * k))
    w = jax.random.uniform(kw_, (cout, cin, k, k), jnp.float32, -bound, bound)
    b = jax.random.uniform(kb_, (cout,), jnp.float32, -bound, bound)
    return w, b


def _init_convT(key, cin, cout, k):
    kw_, kb_ = jax.random.split(key)
    bound = 1.0 / float(np.sqrt(cout * k * k))
    w = jax.random.uniform(kw_, (cin, cout, k, k), jnp.float32, -bound, bound)
    b = jax.random.uniform(kb_, (cout,), jnp.float32, -bound, bound)
    return w, b


def init_params(key):
    keys = jax.random.split(key, 5)
    return {
        "enc_conv1": _init_conv(keys[0], 16, 1, 3),
        "enc_conv2": _init_conv(keys[1], 8, 16, 2),
        "dec_convt1": _init_convT(keys[2], 8, 16, 3),
        "dec_convt2": _init_convT(keys[3], 16, 8, 3),
        "dec_convt3": _init_convT(keys[4], 8, 1, 2),
    }


def prepare_params(params, batch):
    """One-time repack of PyTorch-layout weights into 3 pre-folded matmul
    operand arrays (3 input DMAs instead of 11 tiny ones)."""
    N = batch
    w1, b1 = [np.asarray(a, np.float32) for a in params["enc_conv1"]]     # (16,1,3,3),(16,)
    w2, b2 = [np.asarray(a, np.float32) for a in params["enc_conv2"]]     # (8,16,2,2),(8,)
    t1w, t1b = [np.asarray(a, np.float32) for a in params["dec_convt1"]]  # (8,16,3,3),(16,)
    t2w, t2b = [np.asarray(a, np.float32) for a in params["dec_convt2"]]  # (16,8,3,3),(8,)
    t3w, t3b = [np.asarray(a, np.float32) for a in params["dec_convt3"]]  # (8,1,2,2),(1,)

    lay, rows, width = _small_slab_layout(N)
    small = np.zeros((rows, width), np.float32)

    def put(name, val):
        r0, nr, nc = lay[name]
        small[r0:r0 + nr, 0:nc] = val

    put("w1", w1[:, 0].transpose(1, 2, 0).reshape(9, 16))        # (ka,kb) x cout
    put("b1", b1.reshape(1, 16))

    # conv2 patch selection: row ((ka,kb),(i,j),n) <- pooled1 row (n,yy,xx);
    # all-zero rows implement the padding=1 ring.
    sel = np.zeros((16 * N, 9 * N), np.float32)
    for ka in range(2):
        for kb in range(2):
            tap = ka * 2 + kb
            for i in range(2):
                for j in range(2):
                    yy, xx = 2 * i + ka - 1, 2 * j + kb - 1
                    if yy < 0 or xx < 0:
                        continue                              # padded position
                    for n in range(N):
                        sel[(tap * 4 + i * 2 + j) * N + n,
                            n * 9 + yy * 3 + xx] = 1.0
    put("sel", sel)
    put("w2", w2.transpose(2, 3, 1, 0).reshape(64, 8))           # (tap,cin) x cout
    put("b2", b2.reshape(1, 8))
    put("wt1", t1w.transpose(0, 2, 3, 1).reshape(8, 144))        # cin x (h,w,cout)
    put("bt1", np.tile(t1b, 9).reshape(1, 144))

    # ConvT2: the 3x3 depth-to-space folded into a block-diagonal weight; last
    # row carries the tiled bias.
    wt2_small = t2w.transpose(0, 2, 3, 1).reshape(16, 72)        # cin x (ka,kb,cout)
    wt2_full = np.zeros((145, 648), np.float32)
    wt2_full[0:144, :] = np.kron(np.eye(9, dtype=np.float32), wt2_small)
    wt2_full[144, :] = np.tile(t2b, 81)

    # crop(pad=1) + ConvT3(2x2,s=2) + depth-to-space folded into one matrix
    # mapping y2 columns ((h,w,ka,kb),cout) -> flat 14x14 output pixels; the
    # cropped-border columns stay all-zero.  Last row is the output bias.
    w3_full = np.zeros((649, 196), np.float32)
    for H2 in range(1, 8):              # pre-crop rows 1..7 survive the crop
        for W2 in range(1, 8):
            hh, ka = divmod(H2, 3)
            ww, kb = divmod(W2, 3)
            ho, wo = H2 - 1, W2 - 1     # cropped coords 0..6
            for c in range(8):
                ci = (hh * 3 + ww) * 72 + (ka * 3 + kb) * 8 + c
                for p in range(2):
                    for q in range(2):
                        w3_full[ci, (2 * ho + p) * 14 + (2 * wo + q)] = t3w[c, 0, p, q]
    w3_full[648, :] = t3b[0]

    return {"small": jnp.asarray(small),
            "wt2": jnp.asarray(wt2_full),
            "w3": jnp.asarray(w3_full)}


# -----------------------------------------------------------------------------
# Plain-JAX (XLA) reference of the PyTorch module, for a numerical self-check
# -----------------------------------------------------------------------------
def _reference_forward(params, x):
    def conv(x, w, b, stride, padding):
        y = jax.lax.conv_general_dilated(
            x, w, (stride, stride), [(padding, padding)] * 2,
            dimension_numbers=("NCHW", "OIHW", "NCHW"))
        return y + b[None, :, None, None]

    def convT(x, w, b, stride, padding):   # valid because stride == kernel_size
        N, Cin, H, W = x.shape
        _, Cout, kh, kw = w.shape
        xm = x.transpose(0, 2, 3, 1).reshape(N * H * W, Cin)
        y = xm @ w.reshape(Cin, Cout * kh * kw) + jnp.repeat(b, kh * kw)[None, :]
        y = y.reshape(N, H, W, Cout, kh, kw).transpose(0, 3, 1, 4, 2, 5)
        y = y.reshape(N, Cout, H * kh, W * kw)
        if padding:
            y = y[:, :, padding:-padding, padding:-padding]
        return y

    def pool(x):
        N, C, H, W = x.shape
        oh, ow = H // 2, W // 2
        return x[:, :, :2 * oh, :2 * ow].reshape(N, C, oh, 2, ow, 2).max(axis=(3, 5))

    w, b = params["enc_conv1"]; h = jnp.maximum(conv(x, w, b, 3, 2), 0.0); h = pool(h)
    w, b = params["enc_conv2"]; h = jnp.maximum(conv(h, w, b, 2, 1), 0.0); h = pool(h)
    w, b = params["dec_convt1"]; h = jnp.maximum(convT(h, w, b, 3, 0), 0.0)
    w, b = params["dec_convt2"]; h = jnp.maximum(convT(h, w, b, 3, 1), 0.0)
    w, b = params["dec_convt3"]; h = jnp.tanh(convT(h, w, b, 2, 0))
    return h


# -----------------------------------------------------------------------------
if __name__ == "__main__":
    key = jax.random.PRNGKey(0)
    k_param, k_data = jax.random.split(key)

    N = 2                                   # MNIST-like batch implied by module
    params = init_params(k_param)           # PyTorch-layout parameters
    kparams = prepare_params(params, N)     # folded matmul operands, packed ONCE

    x = jax.random.normal(k_data, (N, 1, 28, 28), jnp.float32)

    fwd = jax.jit(autoencoder_forward)
    y = jax.block_until_ready(fwd(kparams, x))

    assert y.shape == (N, 1, 14, 14), y.shape
    assert bool(jnp.all(jnp.isfinite(y)))
    assert bool(jnp.all(jnp.abs(y) <= 1.0))          # tanh output range

    # numerical self-check against the plain-JAX reference of the module
    y_ref = jax.block_until_ready(jax.jit(_reference_forward)(params, x))
    err = float(jnp.max(jnp.abs(y - y_ref)))
    assert err < 5e-2, f"kernel/reference mismatch: max|diff|={err}"

    print("KERNEL_OK")
</pallas_src>

<mosaic_0001>
module attributes {stable_mosaic.version = 11 : i64} {
  func.func @kernel(%arg0: memref<72x9xf32, #tpu.memory_space<vmem>>, %arg1: memref<144x144xf32, #tpu.memory_space<vmem>>, %arg2: memref<145x648xf32, #tpu.memory_space<vmem>>, %arg3: memref<649x196xf32, #tpu.memory_space<vmem>>, %arg4: memref<2x196xf32, #tpu.memory_space<vmem>>) attributes {dimension_semantics = [], scalar_prefetch = 0 : i64, scratch_operands = 0 : i64, tpu.core_type = #tpu.core_type<tc>} {
    %c0 = arith.constant 0 : index
    %c0_0 = arith.constant 0 : index
    %0 = vector.load %arg0[%c0, %c0_0] : memref<72x9xf32, #tpu.memory_space<vmem>>, vector<72x9xf32>
    %c0_1 = arith.constant 0 : index
    %c0_2 = arith.constant 0 : index
    %1 = vector.load %arg1[%c0_1, %c0_2] : memref<144x144xf32, #tpu.memory_space<vmem>>, vector<9x16xf32>
    %cst = arith.constant dense<0.000000e+00> : vector<72x16xf32>
    %2 = tpu.matmul %0, %1, %cst {dimension_numbers = #tpu.dot_dimension_numbers<[1], [0], [0], [1], [0, 0, 1, 1], [], []>} : vector<72x9xf32>, vector<9x16xf32>, vector<72x16xf32> -> vector<72x16xf32>
    %3 = vector.extract_strided_slice %2 {offsets = [0, 0], sizes = [18, 16], strides = [1, 1]} : vector<72x16xf32> to vector<18x16xf32>
    %4 = vector.extract_strided_slice %2 {offsets = [18, 0], sizes = [18, 16], strides = [1, 1]} : vector<72x16xf32> to vector<18x16xf32>
    %5 = arith.maximumf %3, %4 : vector<18x16xf32>
    %6 = vector.extract_strided_slice %2 {offsets = [36, 0], sizes = [18, 16], strides = [1, 1]} : vector<72x16xf32> to vector<18x16xf32>
    %7 = vector.extract_strided_slice %2 {offsets = [54, 0], sizes = [18, 16], strides = [1, 1]} : vector<72x16xf32> to vector<18x16xf32>
    %8 = arith.maximumf %6, %7 : vector<18x16xf32>
    %9 = arith.maximumf %5, %8 : vector<18x16xf32>
    %c16 = arith.constant 16 : index
    %c0_3 = arith.constant 0 : index
    %10 = vector.load %arg1[%c16, %c0_3] : memref<144x144xf32, #tpu.memory_space<vmem>>, vector<1x16xf32>
    %11 = vector.broadcast %10 : vector<1x16xf32> to vector<18x16xf32>
    %12 = arith.addf %9, %11 : vector<18x16xf32>
    %cst_4 = arith.constant 0.000000e+00 : f32
    %13 = vector.broadcast %cst_4 : f32 to vector<18x16xf32>
    %14 = arith.maximumf %12, %13 : vector<18x16xf32>
    %c24 = arith.constant 24 : index
    %c0_5 = arith.constant 0 : index
    %15 = vector.load %arg1[%c24, %c0_5] : memref<144x144xf32, #tpu.memory_space<vmem>>, vector<32x18xf32>
    %cst_6 = arith.constant dense<0.000000e+00> : vector<32x16xf32>
    %16 = tpu.matmul %15, %14, %cst_6 {dimension_numbers = #tpu.dot_dimension_numbers<[1], [0], [0], [1], [0, 0, 1, 1], [], []>} : vector<32x18xf32>, vector<18x16xf32>, vector<32x16xf32> -> vector<32x16xf32>
    %c56 = arith.constant 56 : index
    %c0_7 = arith.constant 0 : index
    %17 = vector.load %arg1[%c56, %c0_7] : memref<144x144xf32, #tpu.memory_space<vmem>>, vector<64x8xf32>
    %18 = vector.extract_strided_slice %16 {offsets = [0, 0], sizes = [8, 16], strides = [1, 1]} : vector<32x16xf32> to vector<8x16xf32>
    %19 = vector.extract_strided_slice %17 {offsets = [0, 0], sizes = [16, 8], strides = [1, 1]} : vector<64x8xf32> to vector<16x8xf32>
    %cst_8 = arith.constant dense<0.000000e+00> : vector<8x8xf32>
    %20 = tpu.matmul %18, %19, %cst_8 {dimension_numbers = #tpu.dot_dimension_numbers<[1], [0], [0], [1], [0, 0, 1, 1], [], []>} : vector<8x16xf32>, vector<16x8xf32>, vector<8x8xf32> -> vector<8x8xf32>
    %21 = vector.extract_strided_slice %16 {offsets = [8, 0], sizes = [8, 16], strides = [1, 1]} : vector<32x16xf32> to vector<8x16xf32>
    %22 = vector.extract_strided_slice %17 {offsets = [16, 0], sizes = [16, 8], strides = [1, 1]} : vector<64x8xf32> to vector<16x8xf32>
    %cst_9 = arith.constant dense<0.000000e+00> : vector<8x8xf32>
    %23 = tpu.matmul %21, %22, %cst_9 {dimension_numbers = #tpu.dot_dimension_numbers<[1], [0], [0], [1], [0, 0, 1, 1], [], []>} : vector<8x16xf32>, vector<16x8xf32>, vector<8x8xf32> -> vector<8x8xf32>
    %24 = arith.addf %20, %23 : vector<8x8xf32>
    %25 = vector.extract_strided_slice %16 {offsets = [16, 0], sizes = [8, 16], strides = [1, 1]} : vector<32x16xf32> to vector<8x16xf32>
    %26 = vector.extract_strided_slice %17 {offsets = [32, 0], sizes = [16, 8], strides = [1, 1]} : vector<64x8xf32> to vector<16x8xf32>
    %cst_10 = arith.constant dense<0.000000e+00> : vector<8x8xf32>
    %27 = tpu.matmul %25, %26, %cst_10 {dimension_numbers = #tpu.dot_dimension_numbers<[1], [0], [0], [1], [0, 0, 1, 1], [], []>} : vector<8x16xf32>, vector<16x8xf32>, vector<8x8xf32> -> vector<8x8xf32>
    %28 = arith.addf %24, %27 : vector<8x8xf32>
    %29 = vector.extract_strided_slice %16 {offsets = [24, 0], sizes = [8, 16], strides = [1, 1]} : vector<32x16xf32> to vector<8x16xf32>
    %30 = vector.extract_strided_slice %17 {offsets = [48, 0], sizes = [16, 8], strides = [1, 1]} : vector<64x8xf32> to vector<16x8xf32>
    %cst_11 = arith.constant dense<0.000000e+00> : vector<8x8xf32>
    %31 = tpu.matmul %29, %30, %cst_11 {dimension_numbers = #tpu.dot_dimension_numbers<[1], [0], [0], [1], [0, 0, 1, 1], [], []>} : vector<8x16xf32>, vector<16x8xf32>, vector<8x8xf32> -> vector<8x8xf32>
    %32 = arith.addf %28, %31 : vector<8x8xf32>
    %33 = vector.extract_strided_slice %32 {offsets = [0, 0], sizes = [2, 8], strides = [1, 1]} : vector<8x8xf32> to vector<2x8xf32>
    %34 = vector.extract_strided_slice %32 {offsets = [2, 0], sizes = [2, 8], strides = [1, 1]} : vector<8x8xf32> to vector<2x8xf32>
    %35 = arith.maximumf %33, %34 : vector<2x8xf32>
    %36 = vector.extract_strided_slice %32 {offsets = [4, 0], sizes = [2, 8], strides = [1, 1]} : vector<8x8xf32> to vector<2x8xf32>
    %37 = vector.extract_strided_slice %32 {offsets = [6, 0], sizes = [2, 8], strides = [1, 1]} : vector<8x8xf32> to vector<2x8xf32>
    %38 = arith.maximumf %36, %37 : vector<2x8xf32>
    %39 = arith.maximumf %35, %38 : vector<2x8xf32>
    %c120 = arith.constant 120 : index
    %c0_12 = arith.constant 0 : index
    %40 = vector.load %arg1[%c120, %c0_12] : memref<144x144xf32, #tpu.memory_space<vmem>>, vector<1x8xf32>
    %41 = vector.broadcast %40 : vector<1x8xf32> to vector<2x8xf32>
    %42 = arith.addf %39, %41 : vector<2x8xf32>
    %cst_13 = arith.constant 0.000000e+00 : f32
    %43 = vector.broadcast %cst_13 : f32 to vector<2x8xf32>
    %44 = arith.maximumf %42, %43 : vector<2x8xf32>
    %c128 = arith.constant 128 : index
    %c0_14 = arith.constant 0 : index
    %45 = vector.load %arg1[%c128, %c0_14] : memref<144x144xf32, #tpu.memory_space<vmem>>, vector<8x144xf32>
    %cst_15 = arith.constant dense<0.000000e+00> : vector<2x144xf32>
    %46 = tpu.matmul %44, %45, %cst_15 {dimension_numbers = #tpu.dot_dimension_numbers<[1], [0], [0], [1], [0, 0, 1, 1], [], []>} : vector<2x8xf32>, vector<8x144xf32>, vector<2x144xf32> -> vector<2x144xf32>
    %c136 = arith.constant 136 : index
    %c0_16 = arith.constant 0 : index
    %47 = vector.load %arg1[%c136, %c0_16] : memref<144x144xf32, #tpu.memory_space<vmem>>, vector<1x144xf32>
    %48 = vector.broadcast %47 : vector<1x144xf32> to vector<2x144xf32>
    %49 = arith.addf %46, %48 : vector<2x144xf32>
    %cst_17 = arith.constant 0.000000e+00 : f32
    %50 = vector.broadcast %cst_17 : f32 to vector<2x144xf32>
    %51 = arith.maximumf %49, %50 : vector<2x144xf32>
    %c0_18 = arith.constant 0 : index
    %c0_19 = arith.constant 0 : index
    %52 = vector.load %arg2[%c0_18, %c0_19] : memref<145x648xf32, #tpu.memory_space<vmem>>, vector<144x648xf32>
    %cst_20 = arith.constant dense<0.000000e+00> : vector<2x648xf32>
    %53 = tpu.matmul %51, %52, %cst_20 {dimension_numbers = #tpu.dot_dimension_numbers<[1], [0], [0], [1], [0, 0, 1, 1], [], []>} : vector<2x144xf32>, vector<144x648xf32>, vector<2x648xf32> -> vector<2x648xf32>
    %c144 = arith.constant 144 : index
    %c0_21 = arith.constant 0 : index
    %54 = vector.load %arg2[%c144, %c0_21] : memref<145x648xf32, #tpu.memory_space<vmem>>, vector<1x648xf32>
    %55 = vector.broadcast %54 : vector<1x648xf32> to vector<2x648xf32>
    %56 = arith.addf %53, %55 : vector<2x648xf32>
    %cst_22 = arith.constant 0.000000e+00 : f32
    %57 = vector.broadcast %cst_22 : f32 to vector<2x648xf32>
    %58 = arith.maximumf %56, %57 : vector<2x648xf32>
    %c0_23 = arith.constant 0 : index
    %c0_24 = arith.constant 0 : index
    %59 = vector.load %arg3[%c0_23, %c0_24] : memref<649x196xf32, #tpu.memory_space<vmem>>, vector<648x196xf32>
    %cst_25 = arith.constant dense<0.000000e+00> : vector<2x196xf32>
    %60 = tpu.matmul %58, %59, %cst_25 {dimension_numbers = #tpu.dot_dimension_numbers<[1], [0], [0], [1], [0, 0, 1, 1], [], []>} : vector<2x648xf32>, vector<648x196xf32>, vector<2x196xf32> -> vector<2x196xf32>
    %c648 = arith.constant 648 : index
    %c0_26 = arith.constant 0 : index
    %61 = vector.load %arg3[%c648, %c0_26] : memref<649x196xf32, #tpu.memory_space<vmem>>, vector<1x196xf32>
    %62 = vector.broadcast %61 : vector<1x196xf32> to vector<2x196xf32>
    %63 = arith.addf %60, %62 : vector<2x196xf32>
    %64 = math.tanh %63 : vector<2x196xf32>
    %c0_27 = arith.constant 0 : index
    %c0_28 = arith.constant 0 : index
    %65 = vector.load %arg4[%c0_27, %c0_28] : memref<2x196xf32, #tpu.memory_space<vmem>>, vector<2x196xf32>
    tpu.vector_store %arg4[%c0_27, %c0_28], %64 {strides = array<i32>} : memref<2x196xf32, #tpu.memory_space<vmem>>, vector<2x196xf32>,
    return
  }
}

</mosaic_0001>

<llo_original>
// kernel: autoencoder_forward.1
$region0: #{autoencoder_forward.1}
  #allocation0 [shape = 'u32[]', space=smem, size = 0x4, offset = 0x4, fixed_abs, tag = 'smem constant byte address 0x4 - core index']
  #allocation1 [shape = 'u32[144,128]{1,0:T(1,128)}', space=vmem, size = 0x12000, scoped, tag = 'internal scratch']
  %s0 = inlined_call_operand.vmem [shape: f32[72,9], index: 0, kind: input, shape index: {}]
  %s1 = inlined_call_operand.vmem [shape: f32[144,144], index: 1, kind: input, shape index: {}]
  %s2 = inlined_call_operand.vmem [shape: f32[145,648], index: 2, kind: input, shape index: {}]
  %s3 = inlined_call_operand.vmem [shape: f32[649,196], index: 3, kind: input, shape index: {}]
  %s4 = inlined_call_operand.vmem [shape: f32[2,196], index: 4, kind: output, shape index: {}]
  %s5 = sld [smem:[#allocation0]]
  $region26: #{autoencoder_forward.1} parent=0
    _
  %s7 = ssub.s32 1, %s5
  %s8 = scalar_select 0, %s7, %s5
  // Predicated region
  $region2: #{autoencoder_forward.1} parent=0 // pred_check
    _
  $region3: #{autoencoder_forward.1} parent=0 // pred_check_branch
    %10 = sbr.rel (0) target = $region5
  $region4: #{autoencoder_forward.1} parent=0 // pred_region
    _
  $region5: #{autoencoder_forward.1} parent=0 // pred_fallthru
    _
  // Predicated region
  $region6: #{autoencoder_forward.1} parent=0 // pred_check
    _
  $region7: #{autoencoder_forward.1} parent=0 // pred_check_branch
    %12 = sbr.rel (0) target = $region9
  $region8: #{autoencoder_forward.1} parent=0 // pred_region
    _
  $region9: #{autoencoder_forward.1} parent=0 // pred_fallthru
    _
  // Predicated region
  $region10: #{autoencoder_forward.1} parent=0 // pred_check
    _
  $region11: #{autoencoder_forward.1} parent=0 // pred_check_branch
    %14 = sbr.rel (0) target = $region13
  $region12: #{autoencoder_forward.1} parent=0 // pred_region
    _
  $region13: #{autoencoder_forward.1} parent=0 // pred_fallthru
    _
  // Predicated region
  $region14: #{autoencoder_forward.1} parent=0 // pred_check
    _
  $region15: #{autoencoder_forward.1} parent=0 // pred_check_branch
    %16 = sbr.rel (0) target = $region17
  $region16: #{autoencoder_forward.1} parent=0 // pred_region
    _
  $region17: #{autoencoder_forward.1} parent=0 // pred_fallthru
    _
  %v17 = vld [vmem:[%s0] sm:$0xff]
  %v18 = vld [vmem:[%s0 + $0x8] sm:$0xff]
  %v19 = vld [vmem:[%s0 + $0x10] sm:$0xff]
  %v20 = vld [vmem:[%s0 + $0x18] sm:$0xff]
  %v21 = vld [vmem:[%s0 + $0x20] sm:$0xff]
  %v22 = vld [vmem:[%s0 + $0x28] sm:$0xff]
  %v23 = vld [vmem:[%s0 + $0x30] sm:$0xff]
  %v24 = vld [vmem:[%s0 + $0x38] sm:$0xff]
  %v25 = vld [vmem:[%s0 + $0x40] sm:$0xff]
  %v26 = vld [vmem:[%s1] sm:$0xff]
  %v27 = vld [vmem:[%s1 + $0x10] sm:$0x1]
  %vm28 = vcmask 72704
  %v30 = vsel %vm28, %v17, 0
  %v33 = vsel %vm28, %v18, 0
  %v36 = vsel %vm28, %v19, 0
  %v39 = vsel %vm28, %v20, 0
  %v42 = vsel %vm28, %v21, 0
  %v45 = vsel %vm28, %v22, 0
  %v48 = vsel %vm28, %v23, 0
  %v51 = vsel %vm28, %v24, 0
  %v54 = vsel %vm28, %v25, 0
  %vm56 = vcmask 1040384
  %v58 = vsel %vm56, %v27, 0
  %60 = vmatprep.subr.mxu0 0.0
  %61 = vmatpush1.msra.mxu0 %v26
  %62 = vmatprep.subr.mxu0 0.0
  %63 = vmatpush1.msra.mxu0 %v58
  %64 = vmatprep.subr.mxu0 0.0
  %65 = vmatpush1.msra.mxu0 0.0
  %66 = vmatprep.subr.mxu0 0.0
  %67 = vmatpush1.msra.mxu0 0.0
  %68 = vmatprep.subr.mxu0 0.0
  %69 = vmatpush1.msra.mxu0 0.0
  %70 = vmatprep.subr.mxu0 0.0
  %71 = vmatpush1.msra.mxu0 0.0
  %72 = vmatprep.subr.mxu0 0.0
  %73 = vmatpush1.msra.mxu0 0.0
  %74 = vmatprep.subr.mxu0 0.0
  %75 = vmatpush1.msra.mxu0 0.0
  %76 = vmatprep.subr.mxu0 0.0
  %77 = vmatpush1.msra.mxu0 0.0
  %78 = vmatprep.subr.mxu0 0.0
  %79 = vmatpush1.msra.mxu0 0.0
  %80 = vmatprep.subr.mxu0 0.0
  %81 = vmatpush1.msra.mxu0 0.0
  %82 = vmatprep.subr.mxu0 0.0
  %83 = vmatpush1.msra.mxu0 0.0
  %84 = vmatprep.subr.mxu0 0.0
  %85 = vmatpush1.msra.mxu0 0.0
  %86 = vmatprep.subr.mxu0 0.0
  %87 = vmatpush1.msra.mxu0 0.0
  %88 = vmatprep.subr.mxu0 0.0
  %89 = vmatpush1.msra.mxu0 0.0
  %90 = vmatprep.subr.mxu0 0.0
  %91 = vmatpush1.msra.mxu0 0.0
  %92 = vmatprep.subr.mxu0 0.0
  %93 = vmatpush1.msra.mxu0 0.0
  %94 = vmatprep.subr.mxu0 0.0
  %95 = vmatpush1.msra.mxu0 0.0
  %96 = vmatprep.subr.mxu0 0.0
  %97 = vmatpush1.msra.mxu0 0.0
  %98 = vmatprep.subr.mxu0 0.0
  %99 = vmatpush1.msra.mxu0 0.0
  %100 = vmatprep.subr.mxu0 0.0
  %101 = vmatpush1.msra.mxu0 0.0
  %102 = vmatprep.subr.mxu0 0.0
  %103 = vmatpush1.msra.mxu0 0.0
  %104 = vmatprep.subr.mxu0 0.0
  %105 = vmatpush1.msra.mxu0 0.0
  %106 = vmatprep.subr.mxu0 0.0
  %107 = vmatpush1.msra.mxu0 0.0
  %108 = vmatprep.subr.mxu0 0.0
  %109 = vmatpush1.msra.mxu0 0.0
  %110 = vmatprep.subr.mxu0 0.0
  %111 = vmatpush1.msra.mxu0 0.0
  %112 = vmatprep.subr.mxu0 0.0
  %113 = vmatpush1.msra.mxu0 0.0
  %114 = vmatprep.subr.mxu0 0.0
  %115 = vmatpush1.msra.mxu0 0.0
  %116 = vmatprep.subr.mxu0 0.0
  %117 = vmatpush1.msra.mxu0 0.0
  %118 = vmatprep.subr.mxu0 0.0
  %119 = vmatpush1.msra.mxu0 0.0
  %120 = vmatprep.subr.mxu0 0.0
  %121 = vmatpush1.msra.mxu0 0.0
  %122 = vmatprep.subr.mxu0 0.0
  %123 = vmatpush1.msra.mxu0 0.0
  %124 = vmatprep.mubr.f32.mxu0 0.0
  %125 = vmatmul.mubr.f32.gmra.mrb[0].mxu0 %v30
  %v126 = vpop.f32.mrb[0].mxu0
  %v127 = vadd.f32 0.0, %v126
  %v128 = vpop.f32.mrb[0].mxu0
  %129 = vmatprep.mubr.f32.mxu0 0.0
  %130 = vmatmul.mubr.f32.gmra.mrb[0].mxu0 %v33
  %v131 = vpop.f32.mrb[0].mxu0
  %v132 = vadd.f32 0.0, %v131
  %v133 = vpop.f32.mrb[0].mxu0
  %134 = vmatprep.mubr.f32.mxu0 0.0
  %135 = vmatmul.mubr.f32.gmra.mrb[0].mxu0 %v36
  %v136 = vpop.f32.mrb[0].mxu0
  %v137 = vadd.f32 0.0, %v136
  %v138 = vpop.f32.mrb[0].mxu0
  %139 = vmatprep.mubr.f32.mxu0 0.0
  %140 = vmatmul.mubr.f32.gmra.mrb[0].mxu0 %v39
  %v141 = vpop.f32.mrb[0].mxu0
  %v142 = vadd.f32 0.0, %v141
  %v143 = vpop.f32.mrb[0].mxu0
  %144 = vmatprep.mubr.f32.mxu0 0.0
  %145 = vmatmul.mubr.f32.gmra.mrb[0].mxu0 %v42
  %v146 = vpop.f32.mrb[0].mxu0
  %v147 = vadd.f32 0.0, %v146
  %v148 = vpop.f32.mrb[0].mxu0
  %149 = vmatprep.mubr.f32.mxu0 0.0
  %150 = vmatmul.mubr.f32.gmra.mrb[0].mxu0 %v45
  %v151 = vpop.f32.mrb[0].mxu0
  %v152 = vadd.f32 0.0, %v151
  %v153 = vpop.f32.mrb[0].mxu0
  %154 = vmatprep.mubr.f32.mxu0 0.0
  %155 = vmatmul.mubr.f32.gmra.mrb[0].mxu0 %v48
  %v156 = vpop.f32.mrb[0].mxu0
  %v157 = vadd.f32 0.0, %v156
  %v158 = vpop.f32.mrb[0].mxu0
  %159 = vmatprep.mubr.f32.mxu0 0.0
  %160 = vmatmul.mubr.f32.gmra.mrb[0].mxu0 %v51
  %v161 = vpop.f32.mrb[0].mxu0
  %v162 = vadd.f32 0.0, %v161
  %v163 = vpop.f32.mrb[0].mxu0
  %164 = vmatprep.mubr.f32.mxu0 0.0
  %165 = vmatmul.mubr.f32.gmra.mrb[0].mxu0 %v54
  %v166 = vpop.f32.mrb[0].mxu0
  %v167 = vadd.f32 0.0, %v166
  %v168 = vpop.f32.mrb[0].mxu0
  %169 = vdwg.mxu0
  %vm173 = vcmask 1045504
  %v174 = vrot.slane %v137, 2
  %v175 = vrot.slane %v142, 2
  %v176 = vsel %vm173, %v174, %v175
  %v177 = vrot.slane %v147, 2
  %v178 = vsel %vm173, %v175, %v177
  %v182 = vmax.f32 %v127, %v176
  %v183 = vmax.f32 %v132, %v178
  %v184 = vmax.f32 %v137, %v177
  %v188 = vrot.slane %v157, 2
  %v189 = vrot.slane %v162, 2
  %v190 = vsel %vm173, %v188, %v189
  %v191 = vrot.slane %v167, 2
  %v192 = vsel %vm173, %v189, %v191
  %v196 = vmax.f32 %v147, %v190
  %v197 = vmax.f32 %v152, %v192
  %v198 = vmax.f32 %v157, %v191
  %vm202 = vcmask 1043456
  %v203 = vrot.slane %v196, 4
  %v204 = vrot.slane %v197, 4
  %v205 = vsel %vm202, %v203, %v204
  %v206 = vrot.slane %v198, 4
  %v207 = vsel %vm202, %v204, %v206
  %v211 = vmax.f32 %v182, %v205
  %v212 = vmax.f32 %v183, %v207
  %v213 = vmax.f32 %v184, %v206
  %v214 = vld [vmem:[%s1 + $0x20] ss:$0 sm:$0xff]
  %v215 = vadd.f32 %v211, %v214
  %v216 = vadd.f32 %v212, %v214
  %v217 = vadd.f32 %v213, %v214
  %v218 = vmax.f32 %v215, 0.0
  %v219 = vmax.f32 %v216, 0.0
  %v220 = vmax.f32 %v217, 0.0
  %v221 = vld [vmem:[%s1 + $0x30] sm:$0xff]
  %v222 = vld [vmem:[%s1 + $0x40] sm:$0xff]
  %v223 = vld [vmem:[%s1 + $0x50] sm:$0xff]
  %v224 = vld [vmem:[%s1 + $0x60] sm:$0xff]
  %vm225 = vcmask 146432
  %v227 = vsel %vm225, %v221, 0
  %v230 = vsel %vm225, %v222, 0
  %v233 = vsel %vm225, %v223, 0
  %v236 = vsel %vm225, %v224, 0
  %vm238 = vcmask 1041408
  %v240 = vsel %vm238, %v220, 0
  %242 = vmatprep.subr.mxu0 0.0
  %243 = vmatpush1.msra.mxu0 %v218
  %244 = vmatprep.subr.mxu0 0.0
  %245 = vmatpush1.msra.mxu0 %v219
  %246 = vmatprep.subr.mxu0 0.0
  %247 = vmatpush1.msra.mxu0 %v240
  %248 = vmatprep.subr.mxu0 0.0
  %249 = vmatpush1.msra.mxu0 0.0
  %250 = vmatprep.subr.mxu0 0.0
  %251 = vmatpush1.msra.mxu0 0.0
  %252 = vmatprep.subr.mxu0 0.0
  %253 = vmatpush1.msra.mxu0 0.0
  %254 = vmatprep.subr.mxu0 0.0
  %255 = vmatpush1.msra.mxu0 0.0
  %256 = vmatprep.subr.mxu0 0.0
  %257 = vmatpush1.msra.mxu0 0.0
  %258 = vmatprep.subr.mxu0 0.0
  %259 = vmatpush1.msra.mxu0 0.0
  %260 = vmatprep.subr.mxu0 0.0
  %261 = vmatpush1.msra.mxu0 0.0
  %262 = vmatprep.subr.mxu0 0.0
  %263 = vmatpush1.msra.mxu0 0.0
  %264 = vmatprep.subr.mxu0 0.0
  %265 = vmatpush1.msra.mxu0 0.0
  %266 = vmatprep.subr.mxu0 0.0
  %267 = vmatpush1.msra.mxu0 0.0
  %268 = vmatprep.subr.mxu0 0.0
  %269 = vmatpush1.msra.mxu0 0.0
  %270 = vmatprep.subr.mxu0 0.0
  %271 = vmatpush1.msra.mxu0 0.0
  %272 = vmatprep.subr.mxu0 0.0
  %273 = vmatpush1.msra.mxu0 0.0
  %274 = vmatprep.subr.mxu0 0.0
  %275 = vmatpush1.msra.mxu0 0.0
  %276 = vmatprep.subr.mxu0 0.0
  %277 = vmatpush1.msra.mxu0 0.0
  %278 = vmatprep.subr.mxu0 0.0
  %279 = vmatpush1.msra.mxu0 0.0
  %280 = vmatprep.subr.mxu0 0.0
  %281 = vmatpush1.msra.mxu0 0.0
  %282 = vmatprep.subr.mxu0 0.0
  %283 = vmatpush1.msra.mxu0 0.0
  %284 = vmatprep.subr.mxu0 0.0
  %285 = vmatpush1.msra.mxu0 0.0
  %286 = vmatprep.subr.mxu0 0.0
  %287 = vmatpush1.msra.mxu0 0.0
  %288 = vmatprep.subr.mxu0 0.0
  %289 = vmatpush1.msra.mxu0 0.0
  %290 = vmatprep.subr.mxu0 0.0
  %291 = vmatpush1.msra.mxu0 0.0
  %292 = vmatprep.subr.mxu0 0.0
  %293 = vmatpush1.msra.mxu0 0.0
  %294 = vmatprep.subr.mxu0 0.0
  %295 = vmatpush1.msra.mxu0 0.0
  %296 = vmatprep.subr.mxu0 0.0
  %297 = vmatpush1.msra.mxu0 0.0
  %298 = vmatprep.subr.mxu0 0.0
  %299 = vmatpush1.msra.mxu0 0.0
  %300 = vmatprep.subr.mxu0 0.0
  %301 = vmatpush1.msra.mxu0 0.0
  %302 = vmatprep.subr.mxu0 0.0
  %303 = vmatpush1.msra.mxu0 0.0
  %304 = vmatprep.subr.mxu0 0.0
  %305 = vmatpush1.msra.mxu0 0.0
  %306 = vmatprep.mubr.f32.mxu0 0.0
  %307 = vmatmul.mubr.f32.gmra.mrb[0].mxu0 %v227
  %v308 = vpop.f32.mrb[0].mxu0
  %v309 = vadd.f32 0.0, %v308
  %v310 = vpop.f32.mrb[0].mxu0
  %311 = vmatprep.mubr.f32.mxu0 0.0
  %312 = vmatmul.mubr.f32.gmra.mrb[0].mxu0 %v230
  %v313 = vpop.f32.mrb[0].mxu0
  %v314 = vadd.f32 0.0, %v313
  %v315 = vpop.f32.mrb[0].mxu0
  %316 = vmatprep.mubr.f32.mxu0 0.0
  %317 = vmatmul.mubr.f32.gmra.mrb[0].mxu0 %v233
  %v318 = vpop.f32.mrb[0].mxu0
  %v319 = vadd.f32 0.0, %v318
  %v320 = vpop.f32.mrb[0].mxu0
  %321 = vmatprep.mubr.f32.mxu0 0.0
  %322 = vmatmul.mubr.f32.gmra.mrb[0].mxu0 %v236
  %v323 = vpop.f32.mrb[0].mxu0
  %v324 = vadd.f32 0.0, %v323
  %v325 = vpop.f32.mrb[0].mxu0
  %326 = vdwg.mxu0
  %v327 = vld [vmem:[%s1 + $0x70] sm:$0xff]
  %v328 = vld [vmem:[%s1 + $0x80] sm:$0xff]
  %v329 = vld [vmem:[%s1 + $0x90] sm:$0xff]
  %v330 = vld [vmem:[%s1 + $0xa0] sm:$0xff]
  %v331 = vld [vmem:[%s1 + $0xb0] sm:$0xff]
  %v332 = vld [vmem:[%s1 + $0xc0] sm:$0xff]
  %v333 = vld [vmem:[%s1 + $0xd0] sm:$0xff]
  %v334 = vld [vmem:[%s1 + $0xe0] sm:$0xff]
  %vm335 = vcmask 130048
  %v337 = vsel %vm335, %v314, 0
  %339 = vmatprep.subr.mxu0 0.0
  %340 = vmatpush1.msra.mxu0 %v329
  %341 = vmatprep.subr.mxu0 0.0
  %342 = vmatpush1.msra.mxu0 %v330
  %343 = vmatprep.subr.mxu0 0.0
  %344 = vmatpush1.msra.mxu0 0.0
  %345 = vmatprep.subr.mxu0 0.0
  %346 = vmatpush1.msra.mxu0 0.0
  %347 = vmatprep.subr.mxu0 0.0
  %348 = vmatpush1.msra.mxu0 0.0
  %349 = vmatprep.subr.mxu0 0.0
  %350 = vmatpush1.msra.mxu0 0.0
  %351 = vmatprep.subr.mxu0 0.0
  %352 = vmatpush1.msra.mxu0 0.0
  %353 = vmatprep.subr.mxu0 0.0
  %354 = vmatpush1.msra.mxu0 0.0
  %355 = vmatprep.subr.mxu0 0.0
  %356 = vmatpush1.msra.mxu0 0.0
  %357 = vmatprep.subr.mxu0 0.0
  %358 = vmatpush1.msra.mxu0 0.0
  %359 = vmatprep.subr.mxu0 0.0
  %360 = vmatpush1.msra.mxu0 0.0
  %361 = vmatprep.subr.mxu0 0.0
  %362 = vmatpush1.msra.mxu0 0.0
  %363 = vmatprep.subr.mxu0 0.0
  %364 = vmatpush1.msra.mxu0 0.0
  %365 = vmatprep.subr.mxu0 0.0
  %366 = vmatpush1.msra.mxu0 0.0
  %367 = vmatprep.subr.mxu0 0.0
  %368 = vmatpush1.msra.mxu0 0.0
  %369 = vmatprep.subr.mxu0 0.0
  %370 = vmatpush1.msra.mxu0 0.0
  %371 = vmatprep.subr.mxu0 0.0
  %372 = vmatpush1.msra.mxu0 0.0
  %373 = vmatprep.subr.mxu0 0.0
  %374 = vmatpush1.msra.mxu0 0.0
  %375 = vmatprep.subr.mxu0 0.0
  %376 = vmatpush1.msra.mxu0 0.0
  %377 = vmatprep.subr.mxu0 0.0
  %378 = vmatpush1.msra.mxu0 0.0
  %379 = vmatprep.subr.mxu0 0.0
  %380 = vmatpush1.msra.mxu0 0.0
  %381 = vmatprep.subr.mxu0 0.0
  %382 = vmatpush1.msra.mxu0 0.0
  %383 = vmatprep.subr.mxu0 0.0
  %384 = vmatpush1.msra.mxu0 0.0
  %385 = vmatprep.subr.mxu0 0.0
  %386 = vmatpush1.msra.mxu0 0.0
  %387 = vmatprep.subr.mxu0 0.0
  %388 = vmatpush1.msra.mxu0 0.0
  %389 = vmatprep.subr.mxu0 0.0
  %390 = vmatpush1.msra.mxu0 0.0
  %391 = vmatprep.subr.mxu0 0.0
  %392 = vmatpush1.msra.mxu0 0.0
  %393 = vmatprep.subr.mxu0 0.0
  %394 = vmatpush1.msra.mxu0 0.0
  %395 = vmatprep.subr.mxu0 0.0
  %396 = vmatpush1.msra.mxu0 0.0
  %397 = vmatprep.subr.mxu0 0.0
  %398 = vmatpush1.msra.mxu0 0.0
  %399 = vmatprep.subr.mxu0 0.0
  %400 = vmatpush1.msra.mxu0 0.0
  %401 = vmatprep.subr.mxu0 0.0
  %402 = vmatpush1.msra.mxu0 0.0
  %403 = vmatprep.mubr.f32.mxu0 0.0
  %404 = vmatmul.mubr.f32.gmra.mrb[0].mxu0 %v337
  %v405 = vpop.f32.mrb[0].mxu0
  %v406 = vadd.f32 0.0, %v405
  %v407 = vpop.f32.mrb[0].mxu0
  %408 = vdwg.mxu0
  %v410 = vsel %vm335, %v309, 0
  %412 = vmatprep.subr.mxu0 0.0
  %413 = vmatpush1.msra.mxu0 %v327
  %414 = vmatprep.subr.mxu0 0.0
  %415 = vmatpush1.msra.mxu0 %v328
  %416 = vmatprep.subr.mxu0 0.0
  %417 = vmatpush1.msra.mxu0 0.0
  %418 = vmatprep.subr.mxu0 0.0
  %419 = vmatpush1.msra.mxu0 0.0
  %420 = vmatprep.subr.mxu0 0.0
  %421 = vmatpush1.msra.mxu0 0.0
  %422 = vmatprep.subr.mxu0 0.0
  %423 = vmatpush1.msra.mxu0 0.0
  %424 = vmatprep.subr.mxu0 0.0
  %425 = vmatpush1.msra.mxu0 0.0
  %426 = vmatprep.subr.mxu0 0.0
  %427 = vmatpush1.msra.mxu0 0.0
  %428 = vmatprep.subr.mxu0 0.0
  %429 = vmatpush1.msra.mxu0 0.0
  %430 = vmatprep.subr.mxu0 0.0
  %431 = vmatpush1.msra.mxu0 0.0
  %432 = vmatprep.subr.mxu0 0.0
  %433 = vmatpush1.msra.mxu0 0.0
  %434 = vmatprep.subr.mxu0 0.0
  %435 = vmatpush1.msra.mxu0 0.0
  %436 = vmatprep.subr.mxu0 0.0
  %437 = vmatpush1.msra.mxu0 0.0
  %438 = vmatprep.subr.mxu0 0.0
  %439 = vmatpush1.msra.mxu0 0.0
  %440 = vmatprep.subr.mxu0 0.0
  %441 = vmatpush1.msra.mxu0 0.0
  %442 = vmatprep.subr.mxu0 0.0
  %443 = vmatpush1.msra.mxu0 0.0
  %444 = vmatprep.subr.mxu0 0.0
  %445 = vmatpush1.msra.mxu0 0.0
  %446 = vmatprep.subr.mxu0 0.0
  %447 = vmatpush1.msra.mxu0 0.0
  %448 = vmatprep.subr.mxu0 0.0
  %449 = vmatpush1.msra.mxu0 0.0
  %450 = vmatprep.subr.mxu0 0.0
  %451 = vmatpush1.msra.mxu0 0.0
  %452 = vmatprep.subr.mxu0 0.0
  %453 = vmatpush1.msra.mxu0 0.0
  %454 = vmatprep.subr.mxu0 0.0
  %455 = vmatpush1.msra.mxu0 0.0
  %456 = vmatprep.subr.mxu0 0.0
  %457 = vmatpush1.msra.mxu0 0.0
  %458 = vmatprep.subr.mxu0 0.0
  %459 = vmatpush1.msra.mxu0 0.0
  %460 = vmatprep.subr.mxu0 0.0
  %461 = vmatpush1.msra.mxu0 0.0
  %462 = vmatprep.subr.mxu0 0.0
  %463 = vmatpush1.msra.mxu0 0.0
  %464 = vmatprep.subr.mxu0 0.0
  %465 = vmatpush1.msra.mxu0 0.0
  %466 = vmatprep.subr.mxu0 0.0
  %467 = vmatpush1.msra.mxu0 0.0
  %468 = vmatprep.subr.mxu0 0.0
  %469 = vmatpush1.msra.mxu0 0.0
  %470 = vmatprep.subr.mxu0 0.0
  %471 = vmatpush1.msra.mxu0 0.0
  %472 = vmatprep.subr.mxu0 0.0
  %473 = vmatpush1.msra.mxu0 0.0
  %474 = vmatprep.subr.mxu0 0.0
  %475 = vmatpush1.msra.mxu0 0.0
  %476 = vmatprep.mubr.f32.mxu0 0.0
  %477 = vmatmul.mubr.f32.gmra.mrb[0].mxu0 %v410
  %v478 = vpop.f32.mrb[0].mxu0
  %v479 = vadd.f32 %v406, %v478
  %v480 = vpop.f32.mrb[0].mxu0
  %481 = vdwg.mxu0
  %v483 = vsel %vm335, %v319, 0
  %485 = vmatprep.subr.mxu0 0.0
  %486 = vmatpush1.msra.mxu0 %v331
  %487 = vmatprep.subr.mxu0 0.0
  %488 = vmatpush1.msra.mxu0 %v332
  %489 = vmatprep.subr.mxu0 0.0
  %490 = vmatpush1.msra.mxu0 0.0
  %491 = vmatprep.subr.mxu0 0.0
  %492 = vmatpush1.msra.mxu0 0.0
  %493 = vmatprep.subr.mxu0 0.0
  %494 = vmatpush1.msra.mxu0 0.0
  %495 = vmatprep.subr.mxu0 0.0
  %496 = vmatpush1.msra.mxu0 0.0
  %497 = vmatprep.subr.mxu0 0.0
  %498 = vmatpush1.msra.mxu0 0.0
  %499 = vmatprep.subr.mxu0 0.0
  %500 = vmatpush1.msra.mxu0 0.0
  %501 = vmatprep.subr.mxu0 0.0
  %502 = vmatpush1.msra.mxu0 0.0
  %503 = vmatprep.subr.mxu0 0.0
  %504 = vmatpush1.msra.mxu0 0.0
  %505 = vmatprep.subr.mxu0 0.0
  %506 = vmatpush1.msra.mxu0 0.0
  %507 = vmatprep.subr.mxu0 0.0
  %508 = vmatpush1.msra.mxu0 0.0
  %509 = vmatprep.subr.mxu0 0.0
  %510 = vmatpush1.msra.mxu0 0.0
  %511 = vmatprep.subr.mxu0 0.0
  %512 = vmatpush1.msra.mxu0 0.0
  %513 = vmatprep.subr.mxu0 0.0
  %514 = vmatpush1.msra.mxu0 0.0
  %515 = vmatprep.subr.mxu0 0.0
  %516 = vmatpush1.msra.mxu0 0.0
  %517 = vmatprep.subr.mxu0 0.0
  %518 = vmatpush1.msra.mxu0 0.0
  %519 = vmatprep.subr.mxu0 0.0
  %520 = vmatpush1.msra.mxu0 0.0
  %521 = vmatprep.subr.mxu0 0.0
  %522 = vmatpush1.msra.mxu0 0.0
  %523 = vmatprep.subr.mxu0 0.0
  %524 = vmatpush1.msra.mxu0 0.0
  %525 = vmatprep.subr.mxu0 0.0
  %526 = vmatpush1.msra.mxu0 0.0
  %527 = vmatprep.subr.mxu0 0.0
  %528 = vmatpush1.msra.mxu0 0.0
  %529 = vmatprep.subr.mxu0 0.0
  %530 = vmatpush1.msra.mxu0 0.0
  %531 = vmatprep.subr.mxu0 0.0
  %532 = vmatpush1.msra.mxu0 0.0
  %533 = vmatprep.subr.mxu0 0.0
  %534 = vmatpush1.msra.mxu0 0.0
  %535 = vmatprep.subr.mxu0 0.0
  %536 = vmatpush1.msra.mxu0 0.0
  %537 = vmatprep.subr.mxu0 0.0
  %538 = vmatpush1.msra.mxu0 0.0
  %539 = vmatprep.subr.mxu0 0.0
  %540 = vmatpush1.msra.mxu0 0.0
  %541 = vmatprep.subr.mxu0 0.0
  %542 = vmatpush1.msra.mxu0 0.0
  %543 = vmatprep.subr.mxu0 0.0
  %544 = vmatpush1.msra.mxu0 0.0
  %545 = vmatprep.subr.mxu0 0.0
  %546 = vmatpush1.msra.mxu0 0.0
  %547 = vmatprep.subr.mxu0 0.0
  %548 = vmatpush1.msra.mxu0 0.0
  %549 = vmatprep.mubr.f32.mxu0 0.0
  %550 = vmatmul.mubr.f32.gmra.mrb[0].mxu0 %v483
  %v551 = vpop.f32.mrb[0].mxu0
  %v552 = vadd.f32 0.0, %v551
  %v553 = vpop.f32.mrb[0].mxu0
  %554 = vdwg.mxu0
  %v555 = vadd.f32 %v479, %v552
  %v557 = vsel %vm335, %v324, 0
  %559 = vmatprep.subr.mxu0 0.0
  %560 = vmatpush1.msra.mxu0 %v333
  %561 = vmatprep.subr.mxu0 0.0
  %562 = vmatpush1.msra.mxu0 %v334
  %563 = vmatprep.subr.mxu0 0.0
  %564 = vmatpush1.msra.mxu0 0.0
  %565 = vmatprep.subr.mxu0 0.0
  %566 = vmatpush1.msra.mxu0 0.0
  %567 = vmatprep.subr.mxu0 0.0
  %568 = vmatpush1.msra.mxu0 0.0
  %569 = vmatprep.subr.mxu0 0.0
  %570 = vmatpush1.msra.mxu0 0.0
  %571 = vmatprep.subr.mxu0 0.0
  %572 = vmatpush1.msra.mxu0 0.0
  %573 = vmatprep.subr.mxu0 0.0
  %574 = vmatpush1.msra.mxu0 0.0
  %575 = vmatprep.subr.mxu0 0.0
  %576 = vmatpush1.msra.mxu0 0.0
  %577 = vmatprep.subr.mxu0 0.0
  %578 = vmatpush1.msra.mxu0 0.0
  %579 = vmatprep.subr.mxu0 0.0
  %580 = vmatpush1.msra.mxu0 0.0
  %581 = vmatprep.subr.mxu0 0.0
  %582 = vmatpush1.msra.mxu0 0.0
  %583 = vmatprep.subr.mxu0 0.0
  %584 = vmatpush1.msra.mxu0 0.0
  %585 = vmatprep.subr.mxu0 0.0
  %586 = vmatpush1.msra.mxu0 0.0
  %587 = vmatprep.subr.mxu0 0.0
  %588 = vmatpush1.msra.mxu0 0.0
  %589 = vmatprep.subr.mxu0 0.0
  %590 = vmatpush1.msra.mxu0 0.0
  %591 = vmatprep.subr.mxu0 0.0
  %592 = vmatpush1.msra.mxu0 0.0
  %593 = vmatprep.subr.mxu0 0.0
  %594 = vmatpush1.msra.mxu0 0.0
  %595 = vmatprep.subr.mxu0 0.0
  %596 = vmatpush1.msra.mxu0 0.0
  %597 = vmatprep.subr.mxu0 0.0
  %598 = vmatpush1.msra.mxu0 0.0
  %599 = vmatprep.subr.mxu0 0.0
  %600 = vmatpush1.msra.mxu0 0.0
  %601 = vmatprep.subr.mxu0 0.0
  %602 = vmatpush1.msra.mxu0 0.0
  %603 = vmatprep.subr.mxu0 0.0
  %604 = vmatpush1.msra.mxu0 0.0
  %605 = vmatprep.subr.mxu0 0.0
  %606 = vmatpush1.msra.mxu0 0.0
  %607 = vmatprep.subr.mxu0 0.0
  %608 = vmatpush1.msra.mxu0 0.0
  %609 = vmatprep.subr.mxu0 0.0
  %610 = vmatpush1.msra.mxu0 0.0
  %611 = vmatprep.subr.mxu0 0.0
  %612 = vmatpush1.msra.mxu0 0.0
  %613 = vmatprep.subr.mxu0 0.0
  %614 = vmatpush1.msra.mxu0 0.0
  %615 = vmatprep.subr.mxu0 0.0
  %616 = vmatpush1.msra.mxu0 0.0
  %617 = vmatprep.subr.mxu0 0.0
  %618 = vmatpush1.msra.mxu0 0.0
  %619 = vmatprep.subr.mxu0 0.0
  %620 = vmatpush1.msra.mxu0 0.0
  %621 = vmatprep.subr.mxu0 0.0
  %622 = vmatpush1.msra.mxu0 0.0
  %623 = vmatprep.mubr.f32.mxu0 0.0
  %624 = vmatmul.mubr.f32.gmra.mrb[0].mxu0 %v557
  %v625 = vpop.f32.mrb[0].mxu0
  %v626 = vadd.f32 0.0, %v625
  %v627 = vpop.f32.mrb[0].mxu0
  %628 = vdwg.mxu0
  %v629 = vadd.f32 %v555, %v626
  %v631 = vrot.slane %v629, 2
  %v633 = vmax.f32 %v629, %v631
  %v635 = vrot.slane %v633, 4
  %v637 = vmax.f32 %v633, %v635
  %v638 = vld [vmem:[%s1 + $0xf0] ss:$0 sm:$0xff]
  %v639 = vadd.f32 %v637, %v638
  %v640 = vmax.f32 %v639, 0.0
  %v641 = vld [vmem:[%s1 + $0x100] sm:$0xff]
  %v642 = vld [vmem:[%s1 + $0x108] sm:$0xff]
  %s643 = scalar_lea.vmem %s1, 272
  %v644 = vld [vmem:[%s643] ss:$8 sm:$0x3]
  %v646 = vlaneseq
  %v647 = vshrl.u32 %v646, 7
  %v648 = vsub.s32 0, %v647
  %v649 = vrot.slane %v644, %v648
  %v650 = vlaneseq
  %v651 = vshrl.u32 %v650, 7
  %v652 = vsub.s32 1, %v651
  %v653 = vrot.slane %v644, %v652
  %vm656 = vcmask 64512
  %v658 = vsel %vm656, %v640, 0
  %660 = vmatprep.subr.mxu0 %v642
  %661 = vmatpush1.msra.mxu0 %v641
  %662 = vmatprep.subr.mxu0 0.0
  %663 = vmatpush1.msra.mxu0 0.0
  %664 = vmatprep.subr.mxu0 0.0
  %665 = vmatpush1.msra.mxu0 0.0
  %666 = vmatprep.subr.mxu0 0.0
  %667 = vmatpush1.msra.mxu0 0.0
  %668 = vmatprep.subr.mxu0 0.0
  %669 = vmatpush1.msra.mxu0 0.0
  %670 = vmatprep.subr.mxu0 0.0
  %671 = vmatpush1.msra.mxu0 0.0
  %672 = vmatprep.subr.mxu0 0.0
  %673 = vmatpush1.msra.mxu0 0.0
  %674 = vmatprep.subr.mxu0 0.0
  %675 = vmatpush1.msra.mxu0 0.0
  %676 = vmatprep.subr.mxu0 0.0
  %677 = vmatpush1.msra.mxu0 0.0
  %678 = vmatprep.subr.mxu0 0.0
  %679 = vmatpush1.msra.mxu0 0.0
  %680 = vmatprep.subr.mxu0 0.0
  %681 = vmatpush1.msra.mxu0 0.0
  %682 = vmatprep.subr.mxu0 0.0
  %683 = vmatpush1.msra.mxu0 0.0
  %684 = vmatprep.subr.mxu0 0.0
  %685 = vmatpush1.msra.mxu0 0.0
  %686 = vmatprep.subr.mxu0 0.0
  %687 = vmatpush1.msra.mxu0 0.0
  %688 = vmatprep.subr.mxu0 0.0
  %689 = vmatpush1.msra.mxu0 0.0
  %690 = vmatprep.subr.mxu0 0.0
  %691 = vmatpush1.msra.mxu0 0.0
  %692 = vmatprep.subr.mxu0 0.0
  %693 = vmatpush1.msra.mxu0 0.0
  %694 = vmatprep.subr.mxu0 0.0
  %695 = vmatpush1.msra.mxu0 0.0
  %696 = vmatprep.subr.mxu0 0.0
  %697 = vmatpush1.msra.mxu0 0.0
  %698 = vmatprep.subr.mxu0 0.0
  %699 = vmatpush1.msra.mxu0 0.0
  %700 = vmatprep.subr.mxu0 0.0
  %701 = vmatpush1.msra.mxu0 0.0
  %702 = vmatprep.subr.mxu0 0.0
  %703 = vmatpush1.msra.mxu0 0.0
  %704 = vmatprep.subr.mxu0 0.0
  %705 = vmatpush1.msra.mxu0 0.0
  %706 = vmatprep.subr.mxu0 0.0
  %707 = vmatpush1.msra.mxu0 0.0
  %708 = vmatprep.subr.mxu0 0.0
  %709 = vmatpush1.msra.mxu0 0.0
  %710 = vmatprep.subr.mxu0 0.0
  %711 = vmatpush1.msra.mxu0 0.0
  %712 = vmatprep.subr.mxu0 0.0
  %713 = vmatpush1.msra.mxu0 0.0
  %714 = vmatprep.subr.mxu0 0.0
  %715 = vmatpush1.msra.mxu0 0.0
  %716 = vmatprep.subr.mxu0 0.0
  %717 = vmatpush1.msra.mxu0 0.0
  %718 = vmatprep.subr.mxu0 0.0
  %719 = vmatpush1.msra.mxu0 0.0
  %720 = vmatprep.subr.mxu0 0.0
  %721 = vmatpush1.msra.mxu0 0.0
  %722 = vmatprep.subr.mxu0 0.0
  %723 = vmatpush1.msra.mxu0 0.0
  %724 = vmatprep.mubr.f32.mxu0 0.0
  %725 = vmatmul.mubr.f32.gmra.mrb[0].mxu0 %v658
  %v726 = vpop.f32.mrb[0].mxu0
  %v727 = vadd.f32 %v649, %v726
  %v728 = vpop.f32.mrb[0].mxu0
  %v729 = vadd.f32 %v653, %v728
  %730 = vdwg.mxu0
  %v731 = vmax.f32 %v727, 0.0
  %v732 = vmax.f32 %v729, 0.0
  %v733 = vld [vmem:[%s2] sm:$0xff]
  %v734 = vld [vmem:[%s2 + $0x8] sm:$0xff]
  %v735 = vld [vmem:[%s2 + $0x10] sm:$0xff]
  %v736 = vld [vmem:[%s2 + $0x18] sm:$0xff]
  %v737 = vld [vmem:[%s2 + $0x20] sm:$0xff]
  %v738 = vld [vmem:[%s2 + $0x28] sm:$0xff]
  %v739 = vld [vmem:[%s2 + $0x30] sm:$0xff]
  %v740 = vld [vmem:[%s2 + $0x38] sm:$0xff]
  %v741 = vld [vmem:[%s2 + $0x40] sm:$0xff]
  %v742 = vld [vmem:[%s2 + $0x48] sm:$0xff]
  %v743 = vld [vmem:[%s2 + $0x50] sm:$0xff]
  %v744 = vld [vmem:[%s2 + $0x58] sm:$0xff]
  %v745 = vld [vmem:[%s2 + $0x60] sm:$0xff]
  %v746 = vld [vmem:[%s2 + $0x68] sm:$0xff]
  %v747 = vld [vmem:[%s2 + $0x70] sm:$0xff]
  %v748 = vld [vmem:[%s2 + $0x78] sm:$0xff]
  %v749 = vld [vmem:[%s2 + $0x80] sm:$0xff]
  %v750 = vld [vmem:[%s2 + $0x88] sm:$0xff]
  %v751 = vld [vmem:[%s2 + $0x90] sm:$0xff]
  %v752 = vld [vmem:[%s2 + $0x98] sm:$0xff]
  %v753 = vld [vmem:[%s2 + $0xa0] sm:$0xff]
  %v754 = vld [vmem:[%s2 + $0xa8] sm:$0xff]
  %v755 = vld [vmem:[%s2 + $0xb0] sm:$0xff]
  %v756 = vld [vmem:[%s2 + $0xb8] sm:$0xff]
  %v757 = vld [vmem:[%s2 + $0xc0] sm:$0xff]
  %v758 = vld [vmem:[%s2 + $0xc8] sm:$0xff]
  %v759 = vld [vmem:[%s2 + $0xd0] sm:$0xff]
  %v760 = vld [vmem:[%s2 + $0xd8] sm:$0xff]
  %v761 = vld [vmem:[%s2 + $0xe0] sm:$0xff]
  %v762 = vld [vmem:[%s2 + $0xe8] sm:$0xff]
  %v763 = vld [vmem:[%s2 + $0xf0] sm:$0xff]
  %v764 = vld [vmem:[%s2 + $0xf8] sm:$0xff]
  %v765 = vld [vmem:[%s2 + $0x100] sm:$0xff]
  %v766 = vld [vmem:[%s2 + $0x108] sm:$0xff]
  %v767 = vld [vmem:[%s2 + $0x110] sm:$0xff]
  %v768 = vld [vmem:[%s2 + $0x118] sm:$0xff]
  %v769 = vld [vmem:[%s2 + $0x120] sm:$0xff]
  %v770 = vld [vmem:[%s2 + $0x128] sm:$0xff]
  %v771 = vld [vmem:[%s2 + $0x130] sm:$0xff]
  %v772 = vld [vmem:[%s2 + $0x138] sm:$0xff]
  %v773 = vld [vmem:[%s2 + $0x140] sm:$0xff]
  %v774 = vld [vmem:[%s2 + $0x148] sm:$0xff]
  %v775 = vld [vmem:[%s2 + $0x150] sm:$0xff]
  %v776 = vld [vmem:[%s2 + $0x158] sm:$0xff]
  %v777 = vld [vmem:[%s2 + $0x160] sm:$0xff]
  %v778 = vld [vmem:[%s2 + $0x168] sm:$0xff]
  %v779 = vld [vmem:[%s2 + $0x170] sm:$0xff]
  %v780 = vld [vmem:[%s2 + $0x178] sm:$0xff]
  %v781 = vld [vmem:[%s2 + $0x180] sm:$0xff]
  %v782 = vld [vmem:[%s2 + $0x188] sm:$0xff]
  %v783 = vld [vmem:[%s2 + $0x190] sm:$0xff]
  %v784 = vld [vmem:[%s2 + $0x198] sm:$0xff]
  %v785 = vld [vmem:[%s2 + $0x1a0] sm:$0xff]
  %v786 = vld [vmem:[%s2 + $0x1a8] sm:$0xff]
  %v787 = vld [vmem:[%s2 + $0x1b0] sm:$0xff]
  %v788 = vld [vmem:[%s2 + $0x1b8] sm:$0xff]
  %v789 = vld [vmem:[%s2 + $0x1c0] sm:$0xff]
  %v790 = vld [vmem:[%s2 + $0x1c8] sm:$0xff]
  %v791 = vld [vmem:[%s2 + $0x1d0] sm:$0xff]
  %v792 = vld [vmem:[%s2 + $0x1d8] sm:$0xff]
  %v793 = vld [vmem:[%s2 + $0x1e0] sm:$0xff]
  %v794 = vld [vmem:[%s2 + $0x1e8] sm:$0xff]
  %v795 = vld [vmem:[%s2 + $0x1f0] sm:$0xff]
  %v796 = vld [vmem:[%s2 + $0x1f8] sm:$0xff]
  %v797 = vld [vmem:[%s2 + $0x200] sm:$0xff]
  %v798 = vld [vmem:[%s2 + $0x208] sm:$0xff]
  %v799 = vld [vmem:[%s2 + $0x210] sm:$0xff]
  %v800 = vld [vmem:[%s2 + $0x218] sm:$0xff]
  %v801 = vld [vmem:[%s2 + $0x220] sm:$0xff]
  %v802 = vld [vmem:[%s2 + $0x228] sm:$0xff]
  %v803 = vld [vmem:[%s2 + $0x230] sm:$0xff]
  %v804 = vld [vmem:[%s2 + $0x238] sm:$0xff]
  %v805 = vld [vmem:[%s2 + $0x240] sm:$0xff]
  %v806 = vld [vmem:[%s2 + $0x248] sm:$0xff]
  %v807 = vld [vmem:[%s2 + $0x250] sm:$0xff]
  %v808 = vld [vmem:[%s2 + $0x258] sm:$0xff]
  %v809 = vld [vmem:[%s2 + $0x260] sm:$0xff]
  %v810 = vld [vmem:[%s2 + $0x268] sm:$0xff]
  %v811 = vld [vmem:[%s2 + $0x270] sm:$0xff]
  %v812 = vld [vmem:[%s2 + $0x278] sm:$0xff]
  %v813 = vld [vmem:[%s2 + $0x280] sm:$0xff]
  %v814 = vld [vmem:[%s2 + $0x288] sm:$0xff]
  %v815 = vld [vmem:[%s2 + $0x290] sm:$0xff]
  %v816 = vld [vmem:[%s2 + $0x298] sm:$0xff]
  %v817 = vld [vmem:[%s2 + $0x2a0] sm:$0xff]
  %v818 = vld [vmem:[%s2 + $0x2a8] sm:$0xff]
  %v819 = vld [vmem:[%s2 + $0x2b0] sm:$0xff]
  %v820 = vld [vmem:[%s2 + $0x2b8] sm:$0xff]
  %v821 = vld [vmem:[%s2 + $0x2c0] sm:$0xff]
  %v822 = vld [vmem:[%s2 + $0x2c8] sm:$0xff]
  %v823 = vld [vmem:[%s2 + $0x2d0] sm:$0xff]
  %v824 = vld [vmem:[%s2 + $0x2d8] sm:$0xff]
  %v825 = vld [vmem:[%s2 + $0x2e0] sm:$0xff]
  %v826 = vld [vmem:[%s2 + $0x2e8] sm:$0xff]
  %v827 = vld [vmem:[%s2 + $0x2f0] sm:$0xff]
  %v828 = vld [vmem:[%s2 + $0x2f8] sm:$0xff]
  %v829 = vld [vmem:[%s2 + $0x300] sm:$0xff]
  %v830 = vld [vmem:[%s2 + $0x308] sm:$0xff]
  %v831 = vld [vmem:[%s2 + $0x310] sm:$0xff]
  %v832 = vld [vmem:[%s2 + $0x318] sm:$0xff]
  %v833 = vld [vmem:[%s2 + $0x320] sm:$0xff]
  %v834 = vld [vmem:[%s2 + $0x328] sm:$0xff]
  %v835 = vld [vmem:[%s2 + $0x330] sm:$0xff]
  %v836 = vld [vmem:[%s2 + $0x338] sm:$0xff]
  %v837 = vld [vmem:[%s2 + $0x340] sm:$0xff]
  %v838 = vld [vmem:[%s2 + $0x348] sm:$0xff]
  %v839 = vld [vmem:[%s2 + $0x350] sm:$0xff]
  %v840 = vld [vmem:[%s2 + $0x358] sm:$0xff]
  %s841 = scalar_lea.vmem %s2, 864
  %v842 = vld [vmem:[%s841] ss:$8 sm:$0xf]
  %v843 = vld [vmem:[%s841] ss:$8 sm:$0x30]
  %v844 = vor.u32 %v842, %v843
  %v846 = vlaneseq
  %v847 = vshrl.u32 %v846, 7
  %v848 = vsub.s32 0, %v847
  %v849 = vrot.slane %v844, %v848
  %v850 = vlaneseq
  %v851 = vshrl.u32 %v850, 7
  %v852 = vsub.s32 1, %v851
  %v853 = vrot.slane %v844, %v852
  %v854 = vlaneseq
  %v855 = vshrl.u32 %v854, 7
  %v856 = vsub.s32 2, %v855
  %v857 = vrot.slane %v844, %v856
  %v858 = vlaneseq
  %v859 = vshrl.u32 %v858, 7
  %v860 = vsub.s32 3, %v859
  %v861 = vrot.slane %v844, %v860
  %v862 = vlaneseq
  %v863 = vshrl.u32 %v862, 7
  %v864 = vsub.s32 4, %v863
  %v865 = vrot.slane %v844, %v864
  %v866 = vlaneseq
  %v867 = vshrl.u32 %v866, 7
  %v868 = vsub.s32 5, %v867
  %v869 = vrot.slane %v844, %v868
  %v877 = vsel %vm335, %v732, 0
  %879 = vmatprep.subr.mxu0 %v734
  %880 = vmatpush1.msra.mxu0 %v733
  %881 = vmatprep.subr.mxu0 %v740
  %882 = vmatpush1.msra.mxu0 %v739
  %883 = vmatprep.subr.mxu0 %v746
  %884 = vmatpush1.msra.mxu0 %v745
  %885 = vmatprep.subr.mxu0 %v752
  %886 = vmatpush1.msra.mxu0 %v751
  %887 = vmatprep.subr.mxu0 %v758
  %888 = vmatpush1.msra.mxu0 %v757
  %889 = vmatprep.subr.mxu0 %v764
  %890 = vmatpush1.msra.mxu0 %v763
  %891 = vmatprep.subr.mxu0 %v770
  %892 = vmatpush1.msra.mxu0 %v769
  %893 = vmatprep.subr.mxu0 %v776
  %894 = vmatpush1.msra.mxu0 %v775
  %895 = vmatprep.subr.mxu0 %v782
  %896 = vmatpush1.msra.mxu0 %v781
  %897 = vmatprep.subr.mxu0 %v788
  %898 = vmatpush1.msra.mxu0 %v787
  %899 = vmatprep.subr.mxu0 %v794
  %900 = vmatpush1.msra.mxu0 %v793
  %901 = vmatprep.subr.mxu0 %v800
  %902 = vmatpush1.msra.mxu0 %v799
  %903 = vmatprep.subr.mxu0 %v806
  %904 = vmatpush1.msra.mxu0 %v805
  %905 = vmatprep.subr.mxu0 %v812
  %906 = vmatpush1.msra.mxu0 %v811
  %907 = vmatprep.subr.mxu0 %v818
  %908 = vmatpush1.msra.mxu0 %v817
  %909 = vmatprep.subr.mxu0 %v824
  %910 = vmatpush1.msra.mxu0 %v823
  %911 = vmatprep.subr.mxu0 %v830
  %912 = vmatpush1.msra.mxu0 %v829
  %913 = vmatprep.subr.mxu0 %v836
  %914 = vmatpush1.msra.mxu0 %v835
  %915 = vmatprep.subr.mxu0 0.0
  %916 = vmatpush1.msra.mxu0 0.0
  %917 = vmatprep.subr.mxu0 0.0
  %918 = vmatpush1.msra.mxu0 0.0
  %919 = vmatprep.subr.mxu0 0.0
  %920 = vmatpush1.msra.mxu0 0.0
  %921 = vmatprep.subr.mxu0 0.0
  %922 = vmatpush1.msra.mxu0 0.0
  %923 = vmatprep.subr.mxu0 0.0
  %924 = vmatpush1.msra.mxu0 0.0
  %925 = vmatprep.subr.mxu0 0.0
  %926 = vmatpush1.msra.mxu0 0.0
  %927 = vmatprep.subr.mxu0 0.0
  %928 = vmatpush1.msra.mxu0 0.0
  %929 = vmatprep.subr.mxu0 0.0
  %930 = vmatpush1.msra.mxu0 0.0
  %931 = vmatprep.subr.mxu0 0.0
  %932 = vmatpush1.msra.mxu0 0.0
  %933 = vmatprep.subr.mxu0 0.0
  %934 = vmatpush1.msra.mxu0 0.0
  %935 = vmatprep.subr.mxu0 0.0
  %936 = vmatpush1.msra.mxu0 0.0
  %937 = vmatprep.subr.mxu0 0.0
  %938 = vmatpush1.msra.mxu0 0.0
  %939 = vmatprep.subr.mxu0 0.0
  %940 = vmatpush1.msra.mxu0 0.0
  %941 = vmatprep.subr.mxu0 0.0
  %942 = vmatpush1.msra.mxu0 0.0
  %943 = vmatprep.mubr.f32.mxu0 %v877
  %944 = vmatmul.mubr.f32.gmra.mrb[0].mxu0 %v731
  %v945 = vpop.f32.mrb[0].mxu0
  %v946 = vadd.f32 %v849, %v945
  %v947 = vpop.f32.mrb[0].mxu0
  %v948 = vadd.f32 %v853, %v947
  %949 = vdwg.mxu0
  %950 = vmatprep.subr.mxu0 %v736
  %951 = vmatpush1.msra.mxu0 %v735
  %952 = vmatprep.subr.mxu0 %v742
  %953 = vmatpush1.msra.mxu0 %v741
  %954 = vmatprep.subr.mxu0 %v748
  %955 = vmatpush1.msra.mxu0 %v747
  %956 = vmatprep.subr.mxu0 %v754
  %957 = vmatpush1.msra.mxu0 %v753
  %958 = vmatprep.subr.mxu0 %v760
  %959 = vmatpush1.msra.mxu0 %v759
  %960 = vmatprep.subr.mxu0 %v766
  %961 = vmatpush1.msra.mxu0 %v765
  %962 = vmatprep.subr.mxu0 %v772
  %963 = vmatpush1.msra.mxu0 %v771
  %964 = vmatprep.subr.mxu0 %v778
  %965 = vmatpush1.msra.mxu0 %v777
  %966 = vmatprep.subr.mxu0 %v784
  %967 = vmatpush1.msra.mxu0 %v783
  %968 = vmatprep.subr.mxu0 %v790
  %969 = vmatpush1.msra.mxu0 %v789
  %970 = vmatprep.subr.mxu0 %v796
  %971 = vmatpush1.msra.mxu0 %v795
  %972 = vmatprep.subr.mxu0 %v802
  %973 = vmatpush1.msra.mxu0 %v801
  %974 = vmatprep.subr.mxu0 %v808
  %975 = vmatpush1.msra.mxu0 %v807
  %976 = vmatprep.subr.mxu0 %v814
  %977 = vmatpush1.msra.mxu0 %v813
  %978 = vmatprep.subr.mxu0 %v820
  %979 = vmatpush1.msra.mxu0 %v819
  %980 = vmatprep.subr.mxu0 %v826
  %981 = vmatpush1.msra.mxu0 %v825
  %982 = vmatprep.subr.mxu0 %v832
  %983 = vmatpush1.msra.mxu0 %v831
  %984 = vmatprep.subr.mxu0 %v838
  %985 = vmatpush1.msra.mxu0 %v837
  %986 = vmatprep.subr.mxu0 0.0
  %987 = vmatpush1.msra.mxu0 0.0
  %988 = vmatprep.subr.mxu0 0.0
  %989 = vmatpush1.msra.mxu0 0.0
  %990 = vmatprep.subr.mxu0 0.0
  %991 = vmatpush1.msra.mxu0 0.0
  %992 = vmatprep.subr.mxu0 0.0
  %993 = vmatpush1.msra.mxu0 0.0
  %994 = vmatprep.subr.mxu0 0.0
  %995 = vmatpush1.msra.mxu0 0.0
  %996 = vmatprep.subr.mxu0 0.0
  %997 = vmatpush1.msra.mxu0 0.0
  %998 = vmatprep.subr.mxu0 0.0
  %999 = vmatpush1.msra.mxu0 0.0
  %1000 = vmatprep.subr.mxu0 0.0
  %1001 = vmatpush1.msra.mxu0 0.0
  %1002 = vmatprep.subr.mxu0 0.0
  %1003 = vmatpush1.msra.mxu0 0.0
  %1004 = vmatprep.subr.mxu0 0.0
  %1005 = vmatpush1.msra.mxu0 0.0
  %1006 = vmatprep.subr.mxu0 0.0
  %1007 = vmatpush1.msra.mxu0 0.0
  %1008 = vmatprep.subr.mxu0 0.0
  %1009 = vmatpush1.msra.mxu0 0.0
  %1010 = vmatprep.subr.mxu0 0.0
  %1011 = vmatpush1.msra.mxu0 0.0
  %1012 = vmatprep.subr.mxu0 0.0
  %1013 = vmatpush1.msra.mxu0 0.0
  %1014 = vmatprep.mubr.f32.mxu0 %v877
  %1015 = vmatmul.mubr.f32.gmra.mrb[0].mxu0 %v731
  %v1016 = vpop.f32.mrb[0].mxu0
  %v1017 = vadd.f32 %v857, %v1016
  %v1018 = vpop.f32.mrb[0].mxu0
  %v1019 = vadd.f32 %v861, %v1018
  %1020 = vdwg.mxu0
  %1021 = vmatprep.subr.mxu0 %v738
  %1022 = vmatpush1.msra.mxu0 %v737
  %1023 = vmatprep.subr.mxu0 %v744
  %1024 = vmatpush1.msra.mxu0 %v743
  %1025 = vmatprep.subr.mxu0 %v750
  %1026 = vmatpush1.msra.mxu0 %v749
  %1027 = vmatprep.subr.mxu0 %v756
  %1028 = vmatpush1.msra.mxu0 %v755
  %1029 = vmatprep.subr.mxu0 %v762
  %1030 = vmatpush1.msra.mxu0 %v761
  %1031 = vmatprep.subr.mxu0 %v768
  %1032 = vmatpush1.msra.mxu0 %v767
  %1033 = vmatprep.subr.mxu0 %v774
  %1034 = vmatpush1.msra.mxu0 %v773
  %1035 = vmatprep.subr.mxu0 %v780
  %1036 = vmatpush1.msra.mxu0 %v779
  %1037 = vmatprep.subr.mxu0 %v786
  %1038 = vmatpush1.msra.mxu0 %v785
  %1039 = vmatprep.subr.mxu0 %v792
  %1040 = vmatpush1.msra.mxu0 %v791
  %1041 = vmatprep.subr.mxu0 %v798
  %1042 = vmatpush1.msra.mxu0 %v797
  %1043 = vmatprep.subr.mxu0 %v804
  %1044 = vmatpush1.msra.mxu0 %v803
  %1045 = vmatprep.subr.mxu0 %v810
  %1046 = vmatpush1.msra.mxu0 %v809
  %1047 = vmatprep.subr.mxu0 %v816
  %1048 = vmatpush1.msra.mxu0 %v815
  %1049 = vmatprep.subr.mxu0 %v822
  %1050 = vmatpush1.msra.mxu0 %v821
  %1051 = vmatprep.subr.mxu0 %v828
  %1052 = vmatpush1.msra.mxu0 %v827
  %1053 = vmatprep.subr.mxu0 %v834
  %1054 = vmatpush1.msra.mxu0 %v833
  %1055 = vmatprep.subr.mxu0 %v840
  %1056 = vmatpush1.msra.mxu0 %v839
  %1057 = vmatprep.subr.mxu0 0.0
  %1058 = vmatpush1.msra.mxu0 0.0
  %1059 = vmatprep.subr.mxu0 0.0
  %1060 = vmatpush1.msra.mxu0 0.0
  %1061 = vmatprep.subr.mxu0 0.0
  %1062 = vmatpush1.msra.mxu0 0.0
  %1063 = vmatprep.subr.mxu0 0.0
  %1064 = vmatpush1.msra.mxu0 0.0
  %1065 = vmatprep.subr.mxu0 0.0
  %1066 = vmatpush1.msra.mxu0 0.0
  %1067 = vmatprep.subr.mxu0 0.0
  %1068 = vmatpush1.msra.mxu0 0.0
  %1069 = vmatprep.subr.mxu0 0.0
  %1070 = vmatpush1.msra.mxu0 0.0
  %1071 = vmatprep.subr.mxu0 0.0
  %1072 = vmatpush1.msra.mxu0 0.0
  %1073 = vmatprep.subr.mxu0 0.0
  %1074 = vmatpush1.msra.mxu0 0.0
  %1075 = vmatprep.subr.mxu0 0.0
  %1076 = vmatpush1.msra.mxu0 0.0
  %1077 = vmatprep.subr.mxu0 0.0
  %1078 = vmatpush1.msra.mxu0 0.0
  %1079 = vmatprep.subr.mxu0 0.0
  %1080 = vmatpush1.msra.mxu0 0.0
  %1081 = vmatprep.subr.mxu0 0.0
  %1082 = vmatpush1.msra.mxu0 0.0
  %1083 = vmatprep.subr.mxu0 0.0
  %1084 = vmatpush1.msra.mxu0 0.0
  %1085 = vmatprep.mubr.f32.mxu0 %v877
  %1086 = vmatmul.mubr.f32.gmra.mrb[0].mxu0 %v731
  %v1087 = vpop.f32.mrb[0].mxu0
  %v1088 = vadd.f32 %v865, %v1087
  %v1089 = vpop.f32.mrb[0].mxu0
  %v1090 = vadd.f32 %v869, %v1089
  %1091 = vdwg.mxu0
  %v1092 = vmax.f32 %v946, 0.0
  %v1093 = vmax.f32 %v948, 0.0
  %v1094 = vmax.f32 %v1017, 0.0
  %v1095 = vmax.f32 %v1019, 0.0
  %v1096 = vmax.f32 %v1088, 0.0
  %v1097 = vmax.f32 %v1090, 0.0
  %v1098 = vld [vmem:[%s3] sm:$0xff]
  %v1099 = vld [vmem:[%s3 + $0x8] sm:$0xff]
  %v1100 = vld [vmem:[%s3 + $0x10] sm:$0xff]
  %v1101 = vld [vmem:[%s3 + $0x18] sm:$0xff]
  %v1102 = vld [vmem:[%s3 + $0x20] sm:$0xff]
  %v1103 = vld [vmem:[%s3 + $0x28] sm:$0xff]
  %v1104 = vld [vmem:[%s3 + $0x30] sm:$0xff]
  %v1105 = vld [vmem:[%s3 + $0x38] sm:$0xff]
  %v1106 = vld [vmem:[%s3 + $0x40] sm:$0xff]
  %v1107 = vld [vmem:[%s3 + $0x48] sm:$0xff]
  %v1108 = vld [vmem:[%s3 + $0x50] sm:$0xff]
  %v1109 = vld [vmem:[%s3 + $0x58] sm:$0xff]
  %v1110 = vld [vmem:[%s3 + $0x60] sm:$0xff]
  %v1111 = vld [vmem:[%s3 + $0x68] sm:$0xff]
  %v1112 = vld [vmem:[%s3 + $0x70] sm:$0xff]
  %v1113 = vld [vmem:[%s3 + $0x78] sm:$0xff]
  %v1114 = vld [vmem:[%s3 + $0x80] sm:$0xff]
  %v1115 = vld [vmem:[%s3 + $0x88] sm:$0xff]
  %v1116 = vld [vmem:[%s3 + $0x90] sm:$0xff]
  %v1117 = vld [vmem:[%s3 + $0x98] sm:$0xff]
  %v1118 = vld [vmem:[%s3 + $0xa0] sm:$0xff]
  %v1119 = vld [vmem:[%s3 + $0xa8] sm:$0xff]
  %v1120 = vld [vmem:[%s3 + $0xb0] sm:$0xff]
  %v1121 = vld [vmem:[%s3 + $0xb8] sm:$0xff]
  %v1122 = vld [vmem:[%s3 + $0xc0] sm:$0xff]
  %v1123 = vld [vmem:[%s3 + $0xc8] sm:$0xff]
  %v1124 = vld [vmem:[%s3 + $0xd0] sm:$0xff]
  %v1125 = vld [vmem:[%s3 + $0xd8] sm:$0xff]
  %v1126 = vld [vmem:[%s3 + $0xe0] sm:$0xff]
  %v1127 = vld [vmem:[%s3 + $0xe8] sm:$0xff]
  %v1128 = vld [vmem:[%s3 + $0xf0] sm:$0xff]
  %v1129 = vld [vmem:[%s3 + $0xf8] sm:$0xff]
  %v1130 = vld [vmem:[%s3 + $0x100] sm:$0xff]
  %v1131 = vld [vmem:[%s3 + $0x108] sm:$0xff]
  %v1132 = vld [vmem:[%s3 + $0x110] sm:$0xff]
  %v1133 = vld [vmem:[%s3 + $0x118] sm:$0xff]
  %v1134 = vld [vmem:[%s3 + $0x120] sm:$0xff]
  %v1135 = vld [vmem:[%s3 + $0x128] sm:$0xff]
  %v1136 = vld [vmem:[%s3 + $0x130] sm:$0xff]
  %v1137 = vld [vmem:[%s3 + $0x138] sm:$0xff]
  %v1138 = vld [vmem:[%s3 + $0x140] sm:$0xff]
  %v1139 = vld [vmem:[%s3 + $0x148] sm:$0xff]
  %v1140 = vld [vmem:[%s3 + $0x150] sm:$0xff]
  %v1141 = vld [vmem:[%s3 + $0x158] sm:$0xff]
  %v1142 = vld [vmem:[%s3 + $0x160] sm:$0xff]
  %v1143 = vld [vmem:[%s3 + $0x168] sm:$0xff]
  %v1144 = vld [vmem:[%s3 + $0x170] sm:$0xff]
  %v1145 = vld [vmem:[%s3 + $0x178] sm:$0xff]
  %v1146 = vld [vmem:[%s3 + $0x180] sm:$0xff]
  %v1147 = vld [vmem:[%s3 + $0x188] sm:$0xff]
  %v1148 = vld [vmem:[%s3 + $0x190] sm:$0xff]
  %v1149 = vld [vmem:[%s3 + $0x198] sm:$0xff]
  %v1150 = vld [vmem:[%s3 + $0x1a0] sm:$0xff]
  %v1151 = vld [vmem:[%s3 + $0x1a8] sm:$0xff]
  %v1152 = vld [vmem:[%s3 + $0x1b0] sm:$0xff]
  %v1153 = vld [vmem:[%s3 + $0x1b8] sm:$0xff]
  %v1154 = vld [vmem:[%s3 + $0x1c0] sm:$0xff]
  %v1155 = vld [vmem:[%s3 + $0x1c8] sm:$0xff]
  %v1156 = vld [vmem:[%s3 + $0x1d0] sm:$0xff]
  %v1157 = vld [vmem:[%s3 + $0x1d8] sm:$0xff]
  %v1158 = vld [vmem:[%s3 + $0x1e0] sm:$0xff]
  %v1159 = vld [vmem:[%s3 + $0x1e8] sm:$0xff]
  %v1160 = vld [vmem:[%s3 + $0x1f0] sm:$0xff]
  %v1161 = vld [vmem:[%s3 + $0x1f8] sm:$0xff]
  %v1162 = vld [vmem:[%s3 + $0x200] sm:$0xff]
  %v1163 = vld [vmem:[%s3 + $0x208] sm:$0xff]
  %v1164 = vld [vmem:[%s3 + $0x210] sm:$0xff]
  %v1165 = vld [vmem:[%s3 + $0x218] sm:$0xff]
  %v1166 = vld [vmem:[%s3 + $0x220] sm:$0xff]
  %v1167 = vld [vmem:[%s3 + $0x228] sm:$0xff]
  %v1168 = vld [vmem:[%s3 + $0x230] sm:$0xff]
  %v1169 = vld [vmem:[%s3 + $0x238] sm:$0xff]
  %v1170 = vld [vmem:[%s3 + $0x240] sm:$0xff]
  %v1171 = vld [vmem:[%s3 + $0x248] sm:$0xff]
  %v1172 = vld [vmem:[%s3 + $0x250] sm:$0xff]
  %v1173 = vld [vmem:[%s3 + $0x258] sm:$0xff]
  %v1174 = vld [vmem:[%s3 + $0x260] sm:$0xff]
  %v1175 = vld [vmem:[%s3 + $0x268] sm:$0xff]
  %v1176 = vld [vmem:[%s3 + $0x270] sm:$0xff]
  %v1177 = vld [vmem:[%s3 + $0x278] sm:$0xff]
  %v1178 = vld [vmem:[%s3 + $0x280] sm:$0xff]
  %v1179 = vld [vmem:[%s3 + $0x288] sm:$0xff]
  %v1180 = vld [vmem:[%s3 + $0x290] sm:$0xff]
  %v1181 = vld [vmem:[%s3 + $0x298] sm:$0xff]
  %v1182 = vld [vmem:[%s3 + $0x2a0] sm:$0xff]
  %v1183 = vld [vmem:[%s3 + $0x2a8] sm:$0xff]
  %v1184 = vld [vmem:[%s3 + $0x2b0] sm:$0xff]
  %v1185 = vld [vmem:[%s3 + $0x2b8] sm:$0xff]
  %v1186 = vld [vmem:[%s3 + $0x2c0] sm:$0xff]
  %v1187 = vld [vmem:[%s3 + $0x2c8] sm:$0xff]
  %v1188 = vld [vmem:[%s3 + $0x2d0] sm:$0xff]
  %v1189 = vld [vmem:[%s3 + $0x2d8] sm:$0xff]
  %v1190 = vld [vmem:[%s3 + $0x2e0] sm:$0xff]
  %v1191 = vld [vmem:[%s3 + $0x2e8] sm:$0xff]
  %v1192 = vld [vmem:[%s3 + $0x2f0] sm:$0xff]
  %v1193 = vld [vmem:[%s3 + $0x2f8] sm:$0xff]
  %v1194 = vld [vmem:[%s3 + $0x300] sm:$0xff]
  %v1195 = vld [vmem:[%s3 + $0x308] sm:$0xff]
  %v1196 = vld [vmem:[%s3 + $0x310] sm:$0xff]
  %v1197 = vld [vmem:[%s3 + $0x318] sm:$0xff]
  %v1198 = vld [vmem:[%s3 + $0x320] sm:$0xff]
  %v1199 = vld [vmem:[%s3 + $0x328] sm:$0xff]
  %v1200 = vld [vmem:[%s3 + $0x330] sm:$0xff]
  %v1201 = vld [vmem:[%s3 + $0x338] sm:$0xff]
  %v1202 = vld [vmem:[%s3 + $0x340] sm:$0xff]
  %v1203 = vld [vmem:[%s3 + $0x348] sm:$0xff]
  %v1204 = vld [vmem:[%s3 + $0x350] sm:$0xff]
  %v1205 = vld [vmem:[%s3 + $0x358] sm:$0xff]
  %v1206 = vld [vmem:[%s3 + $0x360] sm:$0xff]
  %v1207 = vld [vmem:[%s3 + $0x368] sm:$0xff]
  %v1208 = vld [vmem:[%s3 + $0x370] sm:$0xff]
  %v1209 = vld [vmem:[%s3 + $0x378] sm:$0xff]
  %v1210 = vld [vmem:[%s3 + $0x380] sm:$0xff]
  %v1211 = vld [vmem:[%s3 + $0x388] sm:$0xff]
  %v1212 = vld [vmem:[%s3 + $0x390] sm:$0xff]
  %v1213 = vld [vmem:[%s3 + $0x398] sm:$0xff]
  %v1214 = vld [vmem:[%s3 + $0x3a0] sm:$0xff]
  %v1215 = vld [vmem:[%s3 + $0x3a8] sm:$0xff]
  %v1216 = vld [vmem:[%s3 + $0x3b0] sm:$0xff]
  %v1217 = vld [vmem:[%s3 + $0x3b8] sm:$0xff]
  %v1218 = vld [vmem:[%s3 + $0x3c0] sm:$0xff]
  %v1219 = vld [vmem:[%s3 + $0x3c8] sm:$0xff]
  %v1220 = vld [vmem:[%s3 + $0x3d0] sm:$0xff]
  %v1221 = vld [vmem:[%s3 + $0x3d8] sm:$0xff]
  %v1222 = vld [vmem:[%s3 + $0x3e0] sm:$0xff]
  %v1223 = vld [vmem:[%s3 + $0x3e8] sm:$0xff]
  %v1224 = vld [vmem:[%s3 + $0x3f0] sm:$0xff]
  %v1225 = vld [vmem:[%s3 + $0x3f8] sm:$0xff]
  %v1226 = vld [vmem:[%s3 + $0x400] sm:$0xff]
  %v1227 = vld [vmem:[%s3 + $0x408] sm:$0xff]
  %v1228 = vld [vmem:[%s3 + $0x410] sm:$0xff]
  %v1229 = vld [vmem:[%s3 + $0x418] sm:$0xff]
  %v1230 = vld [vmem:[%s3 + $0x420] sm:$0xff]
  %v1231 = vld [vmem:[%s3 + $0x428] sm:$0xff]
  %v1232 = vld [vmem:[%s3 + $0x430] sm:$0xff]
  %v1233 = vld [vmem:[%s3 + $0x438] sm:$0xff]
  %v1234 = vld [vmem:[%s3 + $0x440] sm:$0xff]
  %v1235 = vld [vmem:[%s3 + $0x448] sm:$0xff]
  %v1236 = vld [vmem:[%s3 + $0x450] sm:$0xff]
  %v1237 = vld [vmem:[%s3 + $0x458] sm:$0xff]
  %v1238 = vld [vmem:[%s3 + $0x460] sm:$0xff]
  %v1239 = vld [vmem:[%s3 + $0x468] sm:$0xff]
  %v1240 = vld [vmem:[%s3 + $0x470] sm:$0xff]
  %v1241 = vld [vmem:[%s3 + $0x478] sm:$0xff]
  %v1242 = vld [vmem:[%s3 + $0x480] sm:$0xff]
  %v1243 = vld [vmem:[%s3 + $0x488] sm:$0xff]
  %v1244 = vld [vmem:[%s3 + $0x490] sm:$0xff]
  %v1245 = vld [vmem:[%s3 + $0x498] sm:$0xff]
  %v1246 = vld [vmem:[%s3 + $0x4a0] sm:$0xff]
  %v1247 = vld [vmem:[%s3 + $0x4a8] sm:$0xff]
  %v1248 = vld [vmem:[%s3 + $0x4b0] sm:$0xff]
  %v1249 = vld [vmem:[%s3 + $0x4b8] sm:$0xff]
  %v1250 = vld [vmem:[%s3 + $0x4c0] sm:$0xff]
  %v1251 = vld [vmem:[%s3 + $0x4c8] sm:$0xff]
  %v1252 = vld [vmem:[%s3 + $0x4d0] sm:$0xff]
  %v1253 = vld [vmem:[%s3 + $0x4d8] sm:$0xff]
  %v1254 = vld [vmem:[%s3 + $0x4e0] sm:$0xff]
  %v1255 = vld [vmem:[%s3 + $0x4e8] sm:$0xff]
  %v1256 = vld [vmem:[%s3 + $0x4f0] sm:$0xff]
  %v1257 = vld [vmem:[%s3 + $0x4f8] sm:$0xff]
  %v1258 = vld [vmem:[%s3 + $0x500] sm:$0xff]
  %v1259 = vld [vmem:[%s3 + $0x508] sm:$0xff]
  %s1260 = scalar_lea.vmem %s3, 1296
  %v1261 = vld [vmem:[%s1260] ss:$8 sm:$0x3]
  %v1263 = vlaneseq
  %v1264 = vshrl.u32 %v1263, 7
  %v1265 = vsub.s32 0, %v1264
  %v1266 = vrot.slane %v1261, %v1265
  %v1267 = vlaneseq
  %v1268 = vshrl.u32 %v1267, 7
  %v1269 = vsub.s32 1, %v1268
  %v1270 = vrot.slane %v1261, %v1269
  %v1274 = vsel %vm656, %v1097, 0
  %1276 = vmatprep.subr.mxu0 %v1099
  %1277 = vmatpush1.msra.mxu0 %v1098
  %1278 = vmatprep.subr.mxu0 %v1101
  %1279 = vmatpush1.msra.mxu0 %v1100
  %1280 = vmatprep.subr.mxu0 %v1103
  %1281 = vmatpush1.msra.mxu0 %v1102
  %1282 = vmatprep.subr.mxu0 %v1105
  %1283 = vmatpush1.msra.mxu0 %v1104
  %1284 = vmatprep.subr.mxu0 %v1107
  %1285 = vmatpush1.msra.mxu0 %v1106
  %1286 = vmatprep.subr.mxu0 %v1109
  %1287 = vmatpush1.msra.mxu0 %v1108
  %1288 = vmatprep.subr.mxu0 %v1111
  %1289 = vmatpush1.msra.mxu0 %v1110
  %1290 = vmatprep.subr.mxu0 %v1113
  %1291 = vmatpush1.msra.mxu0 %v1112
  %1292 = vmatprep.subr.mxu0 %v1115
  %1293 = vmatpush1.msra.mxu0 %v1114
  %1294 = vmatprep.subr.mxu0 %v1117
  %1295 = vmatpush1.msra.mxu0 %v1116
  %1296 = vmatprep.subr.mxu0 %v1119
  %1297 = vmatpush1.msra.mxu0 %v1118
  %1298 = vmatprep.subr.mxu0 %v1121
  %1299 = vmatpush1.msra.mxu0 %v1120
  %1300 = vmatprep.subr.mxu0 %v1123
  %1301 = vmatpush1.msra.mxu0 %v1122
  %1302 = vmatprep.subr.mxu0 %v1125
  %1303 = vmatpush1.msra.mxu0 %v1124
  %1304 = vmatprep.subr.mxu0 %v1127
  %1305 = vmatpush1.msra.mxu0 %v1126
  %1306 = vmatprep.subr.mxu0 %v1129
  %1307 = vmatpush1.msra.mxu0 %v1128
  %1308 = vmatprep.subr.mxu0 %v1131
  %1309 = vmatpush1.msra.mxu0 %v1130
  %1310 = vmatprep.subr.mxu0 %v1133
  %1311 = vmatpush1.msra.mxu0 %v1132
  %1312 = vmatprep.subr.mxu0 %v1135
  %1313 = vmatpush1.msra.mxu0 %v1134
  %1314 = vmatprep.subr.mxu0 %v1137
  %1315 = vmatpush1.msra.mxu0 %v1136
  %1316 = vmatprep.subr.mxu0 %v1139
  %1317 = vmatpush1.msra.mxu0 %v1138
  %1318 = vmatprep.subr.mxu0 %v1141
  %1319 = vmatpush1.msra.mxu0 %v1140
  %1320 = vmatprep.subr.mxu0 %v1143
  %1321 = vmatpush1.msra.mxu0 %v1142
  %1322 = vmatprep.subr.mxu0 %v1145
  %1323 = vmatpush1.msra.mxu0 %v1144
  %1324 = vmatprep.subr.mxu0 %v1147
  %1325 = vmatpush1.msra.mxu0 %v1146
  %1326 = vmatprep.subr.mxu0 %v1149
  %1327 = vmatpush1.msra.mxu0 %v1148
  %1328 = vmatprep.subr.mxu0 %v1151
  %1329 = vmatpush1.msra.mxu0 %v1150
  %1330 = vmatprep.subr.mxu0 %v1153
  %1331 = vmatpush1.msra.mxu0 %v1152
  %1332 = vmatprep.subr.mxu0 %v1155
  %1333 = vmatpush1.msra.mxu0 %v1154
  %1334 = vmatprep.subr.mxu0 %v1157
  %1335 = vmatpush1.msra.mxu0 %v1156
  %1336 = vmatprep.subr.mxu0 %v1159
  %1337 = vmatpush1.msra.mxu0 %v1158
  %1338 = vmatprep.subr.mxu0 %v1161
  %1339 = vmatpush1.msra.mxu0 %v1160
  %1340 = vmatprep.mubr.f32.mxu0 %v1093
  %1341 = vmatmul.mubr.f32.gmra.mrb[0].mxu0 %v1092
  %v1342 = vpop.f32.mrb[0].mxu0
  %v1343 = vadd.f32 %v1266, %v1342
  %v1344 = vpop.f32.mrb[0].mxu0
  %v1345 = vadd.f32 %v1270, %v1344
  %1346 = vdwg.mxu0
  %1347 = vmatprep.subr.mxu0 %v1163
  %1348 = vmatpush1.msra.mxu0 %v1162
  %1349 = vmatprep.subr.mxu0 %v1165
  %1350 = vmatpush1.msra.mxu0 %v1164
  %1351 = vmatprep.subr.mxu0 %v1167
  %1352 = vmatpush1.msra.mxu0 %v1166
  %1353 = vmatprep.subr.mxu0 %v1169
  %1354 = vmatpush1.msra.mxu0 %v1168
  %1355 = vmatprep.subr.mxu0 %v1171
  %1356 = vmatpush1.msra.mxu0 %v1170
  %1357 = vmatprep.subr.mxu0 %v1173
  %1358 = vmatpush1.msra.mxu0 %v1172
  %1359 = vmatprep.subr.mxu0 %v1175
  %1360 = vmatpush1.msra.mxu0 %v1174
  %1361 = vmatprep.subr.mxu0 %v1177
  %1362 = vmatpush1.msra.mxu0 %v1176
  %1363 = vmatprep.subr.mxu0 %v1179
  %1364 = vmatpush1.msra.mxu0 %v1178
  %1365 = vmatprep.subr.mxu0 %v1181
  %1366 = vmatpush1.msra.mxu0 %v1180
  %1367 = vmatprep.subr.mxu0 %v1183
  %1368 = vmatpush1.msra.mxu0 %v1182
  %1369 = vmatprep.subr.mxu0 %v1185
  %1370 = vmatpush1.msra.mxu0 %v1184
  %1371 = vmatprep.subr.mxu0 %v1187
  %1372 = vmatpush1.msra.mxu0 %v1186
  %1373 = vmatprep.subr.mxu0 %v1189
  %1374 = vmatpush1.msra.mxu0 %v1188
  %1375 = vmatprep.subr.mxu0 %v1191
  %1376 = vmatpush1.msra.mxu0 %v1190
  %1377 = vmatprep.subr.mxu0 %v1193
  %1378 = vmatpush1.msra.mxu0 %v1192
  %1379 = vmatprep.subr.mxu0 %v1195
  %1380 = vmatpush1.msra.mxu0 %v1194
  %1381 = vmatprep.subr.mxu0 %v1197
  %1382 = vmatpush1.msra.mxu0 %v1196
  %1383 = vmatprep.subr.mxu0 %v1199
  %1384 = vmatpush1.msra.mxu0 %v1198
  %1385 = vmatprep.subr.mxu0 %v1201
  %1386 = vmatpush1.msra.mxu0 %v1200
  %1387 = vmatprep.subr.mxu0 %v1203
  %1388 = vmatpush1.msra.mxu0 %v1202
  %1389 = vmatprep.subr.mxu0 %v1205
  %1390 = vmatpush1.msra.mxu0 %v1204
  %1391 = vmatprep.subr.mxu0 %v1207
  %1392 = vmatpush1.msra.mxu0 %v1206
  %1393 = vmatprep.subr.mxu0 %v1209
  %1394 = vmatpush1.msra.mxu0 %v1208
  %1395 = vmatprep.subr.mxu0 %v1211
  %1396 = vmatpush1.msra.mxu0 %v1210
  %1397 = vmatprep.subr.mxu0 %v1213
  %1398 = vmatpush1.msra.mxu0 %v1212
  %1399 = vmatprep.subr.mxu0 %v1215
  %1400 = vmatpush1.msra.mxu0 %v1214
  %1401 = vmatprep.subr.mxu0 %v1217
  %1402 = vmatpush1.msra.mxu0 %v1216
  %1403 = vmatprep.subr.mxu0 %v1219
  %1404 = vmatpush1.msra.mxu0 %v1218
  %1405 = vmatprep.subr.mxu0 %v1221
  %1406 = vmatpush1.msra.mxu0 %v1220
  %1407 = vmatprep.subr.mxu0 %v1223
  %1408 = vmatpush1.msra.mxu0 %v1222
  %1409 = vmatprep.subr.mxu0 %v1225
  %1410 = vmatpush1.msra.mxu0 %v1224
  %1411 = vmatprep.mubr.f32.mxu0 %v1095
  %1412 = vmatmul.mubr.f32.gmra.mrb[0].mxu0 %v1094
  %v1413 = vpop.f32.mrb[0].mxu0
  %v1414 = vadd.f32 %v1343, %v1413
  %v1415 = vpop.f32.mrb[0].mxu0
  %v1416 = vadd.f32 %v1345, %v1415
  %1417 = vdwg.mxu0
  %1418 = vmatprep.subr.mxu0 %v1227
  %1419 = vmatpush1.msra.mxu0 %v1226
  %1420 = vmatprep.subr.mxu0 %v1229
  %1421 = vmatpush1.msra.mxu0 %v1228
  %1422 = vmatprep.subr.mxu0 %v1231
  %1423 = vmatpush1.msra.mxu0 %v1230
  %1424 = vmatprep.subr.mxu0 %v1233
  %1425 = vmatpush1.msra.mxu0 %v1232
  %1426 = vmatprep.subr.mxu0 %v1235
  %1427 = vmatpush1.msra.mxu0 %v1234
  %1428 = vmatprep.subr.mxu0 %v1237
  %1429 = vmatpush1.msra.mxu0 %v1236
  %1430 = vmatprep.subr.mxu0 %v1239
  %1431 = vmatpush1.msra.mxu0 %v1238
  %1432 = vmatprep.subr.mxu0 %v1241
  %1433 = vmatpush1.msra.mxu0 %v1240
  %1434 = vmatprep.subr.mxu0 %v1243
  %1435 = vmatpush1.msra.mxu0 %v1242
  %1436 = vmatprep.subr.mxu0 %v1245
  %1437 = vmatpush1.msra.mxu0 %v1244
  %1438 = vmatprep.subr.mxu0 %v1247
  %1439 = vmatpush1.msra.mxu0 %v1246
  %1440 = vmatprep.subr.mxu0 %v1249
  %1441 = vmatpush1.msra.mxu0 %v1248
  %1442 = vmatprep.subr.mxu0 %v1251
  %1443 = vmatpush1.msra.mxu0 %v1250
  %1444 = vmatprep.subr.mxu0 %v1253
  %1445 = vmatpush1.msra.mxu0 %v1252
  %1446 = vmatprep.subr.mxu0 %v1255
  %1447 = vmatpush1.msra.mxu0 %v1254
  %1448 = vmatprep.subr.mxu0 %v1257
  %1449 = vmatpush1.msra.mxu0 %v1256
  %1450 = vmatprep.subr.mxu0 %v1259
  %1451 = vmatpush1.msra.mxu0 %v1258
  %1452 = vmatprep.subr.mxu0 0.0
  %1453 = vmatpush1.msra.mxu0 0.0
  %1454 = vmatprep.subr.mxu0 0.0
  %1455 = vmatpush1.msra.mxu0 0.0
  %1456 = vmatprep.subr.mxu0 0.0
  %1457 = vmatpush1.msra.mxu0 0.0
  %1458 = vmatprep.subr.mxu0 0.0
  %1459 = vmatpush1.msra.mxu0 0.0
  %1460 = vmatprep.subr.mxu0 0.0
  %1461 = vmatpush1.msra.mxu0 0.0
  %1462 = vmatprep.subr.mxu0 0.0
  %1463 = vmatpush1.msra.mxu0 0.0
  %1464 = vmatprep.subr.mxu0 0.0
  %1465 = vmatpush1.msra.mxu0 0.0
  %1466 = vmatprep.subr.mxu0 0.0
  %1467 = vmatpush1.msra.mxu0 0.0
  %1468 = vmatprep.subr.mxu0 0.0
  %1469 = vmatpush1.msra.mxu0 0.0
  %1470 = vmatprep.subr.mxu0 0.0
  %1471 = vmatpush1.msra.mxu0 0.0
  %1472 = vmatprep.subr.mxu0 0.0
  %1473 = vmatpush1.msra.mxu0 0.0
  %1474 = vmatprep.subr.mxu0 0.0
  %1475 = vmatpush1.msra.mxu0 0.0
  %1476 = vmatprep.subr.mxu0 0.0
  %1477 = vmatpush1.msra.mxu0 0.0
  %1478 = vmatprep.subr.mxu0 0.0
  %1479 = vmatpush1.msra.mxu0 0.0
  %1480 = vmatprep.subr.mxu0 0.0
  %1481 = vmatpush1.msra.mxu0 0.0
  %1482 = vmatprep.mubr.f32.mxu0 %v1274
  %1483 = vmatmul.mubr.f32.gmra.mrb[0].mxu0 %v1096
  %v1484 = vpop.f32.mrb[0].mxu0
  %v1485 = vadd.f32 %v1414, %v1484
  %v1486 = vpop.f32.mrb[0].mxu0
  %v1487 = vadd.f32 %v1416, %v1486
  %1488 = vdwg.mxu0
  %v1489 = vtanh.pop %v1485
  %v1490 = vtanh.pop %v1487
  %v1493 = vcombine.low %v1489, %v1490
  %v1495 = vunpack.c.l.s4 1983009808
  %v1496 = vunpack.c.0.s8 %v1495
  %v1497 = vlaneseq
  %v1498 = vshrl.u32 %v1497, 7
  %v1499 = vsub.s32 %v1496, %v1498
  %v1500 = vrot.slane %v1493, %v1499
  %vm1502 = vcmask 551938
  %vm1503 = vmor %vm1502, %vm238
  %1504 = vst.msk [vmem:[%s4] sm:$0xf] %vm1503, %v1500
  // Predicated region
  $region18: #{autoencoder_forward.1} parent=0 // pred_check
    _
  $region19: #{autoencoder_forward.1} parent=0 // pred_check_branch
    %1506 = sbr.rel (0) target = $region21
  $region20: #{autoencoder_forward.1} parent=0 // pred_region
    _
  $region21: #{autoencoder_forward.1} parent=0 // pred_fallthru
    _
  // Predicated region
  $region22: #{autoencoder_forward.1} parent=0 // pred_check
    _
  $region23: #{autoencoder_forward.1} parent=0 // pred_check_branch
    %1508 = sbr.rel (0) target = $region25
  $region24: #{autoencoder_forward.1} parent=0 // pred_region
    _
  $region25: #{autoencoder_forward.1} parent=0 // pred_fallthru
    _

</llo_original>
